<compile_context>
chip_gen: v6e
topology: v6e:2x2x1
jax: 0.10.0
libtpu: 0.0.40
codegen_flags: <defaults>
</compile_context>

<pallas_src>
import functools

import jax
import jax.numpy as jnp
from jax import lax
from jax.experimental import pallas as pl
from jax.experimental.pallas import tpu as pltpu


def _bilstm_head_kernel(
    x_ref,      # (T*Bp, E)   f32  time-major rows: row = t*Bp + b
    wih_ref,    # (E, 8H)     f32  both directions, gate-major interleaved cols,
                #                  i/f/o columns pre-scaled by 0.5
    b_ref,      # (1, 8H)     f32  combined (b_ih + b_hh), same layout/scaling
    whh_ref,    # (2H, 8H)    f32  block-diagonal recurrent weights, same layout
    wlin_ref,   # (2H, 1)     f32  final linear weight (fwd rows then bwd rows)
    blin_ref,   # (1, 1)      f32
    out_ref,    # (Bp, 1)     f32
    xp_ref,     # (T*Bp, 8H)  f32  VMEM scratch: hoisted input projection
    *,
    seq_len,
    batch_pad,
):
    T, Bp = seq_len, batch_pad
    H8 = wih_ref.shape[1]       # 8H
    H2 = whh_ref.shape[0]       # 2H
    H = H2 // 2

    # ---- Phase 1: hoisted input projection (one big MXU matmul, M = T*Bp) ----
    xp_ref[...] = (
        jnp.dot(x_ref[...], wih_ref[...], preferred_element_type=jnp.float32)
        + b_ref[...]
    )

    # Lane masks for the 8H gate axis: [i_f i_b f_f f_b g_f g_b o_f o_b].
    lane = lax.broadcasted_iota(jnp.int32, (Bp, H8), 1)
    fwd_lanes = (lane % H2) < H                        # fwd-direction columns
    g_lanes = (lane >= 2 * H2) & (lane < 3 * H2)       # candidate gate (tanh)

    h0 = jnp.zeros((Bp, H2), jnp.float32)
    c0 = jnp.zeros((Bp, H2), jnp.float32)

    def step(t, carry):
        h, c = carry
        # Forward direction consumes xproj at time t, backward at T-1-t;
        # both independent recurrences advance in the same iteration.
        row_f = pl.multiple_of(t * Bp, Bp)
        row_b = pl.multiple_of((T - 1 - t) * Bp, Bp)
        xp_f = xp_ref[pl.ds(row_f, Bp), :]
        xp_b = xp_ref[pl.ds(row_b, Bp), :]
        xp_t = jnp.where(fwd_lanes, xp_f, xp_b)

        # Single fused recurrent matmul for both directions.
        gates = xp_t + jnp.dot(h, whh_ref[...], preferred_element_type=jnp.float32)

        # One lane-dense tanh; sigmoid(i/f/o) = 0.5*tanh(x/2)+0.5 (the 0.5
        # input scale was folded into the i/f/o weight/bias columns).
        ta = jnp.tanh(gates)
        act = jnp.where(g_lanes, ta, 0.5 * ta + 0.5)

        i_g = act[:, 0 * H2:1 * H2]
        f_g = act[:, 1 * H2:2 * H2]
        g_g = act[:, 2 * H2:3 * H2]
        o_g = act[:, 3 * H2:4 * H2]
        c_new = f_g * c + i_g * g_g
        h_new = o_g * jnp.tanh(c_new)
        return h_new, c_new

    h_fin, _ = lax.fori_loop(0, T, step, (h0, c0), unroll=True)

    # Dropout (eval mode) == identity.  Final linear over concat(h_fwd, h_bwd);
    # h_fin already has layout [h_fwd | h_bwd].
    out = (
        jnp.dot(h_fin, wlin_ref[...], preferred_element_type=jnp.float32)
        + blin_ref[...]
    )
    out_ref[...] = out.astype(out_ref.dtype)


def _prep_params(params, hidden_dim):
    """Re-layout PyTorch-style LSTM/Linear weights for the fused kernel.

    Column layout over the 8H gate axis: [i_f i_b f_f f_b g_f g_b o_f o_b]
    (gate-major, fwd/bwd interleaved, H lanes per block).  The i/f/o columns
    (and their biases) are pre-scaled by 0.5 so the kernel evaluates every
    gate with a single tanh: sigmoid(x) = 0.5*tanh(x/2) + 0.5.
    """
    H = hidden_dim
    f32 = jnp.float32

    def gate_cols(mat_t, scale=0.5):
        # mat_t: (K, 4H), column gate order [i, f, g, o] (PyTorch order).
        out = []
        for k in range(4):
            blk = mat_t[:, k * H:(k + 1) * H]
            out.append(blk if k == 2 else blk * scale)
        return out

    wih_f = gate_cols(jnp.transpose(params["wih_f"]).astype(f32))   # 4 x (E, H)
    wih_b = gate_cols(jnp.transpose(params["wih_b"]).astype(f32))
    wih_big = jnp.concatenate(
        [blk for pair in zip(wih_f, wih_b) for blk in pair], axis=1)  # (E, 8H)

    b_f = gate_cols((params["bih_f"] + params["bhh_f"]).reshape(1, 4 * H).astype(f32))
    b_b = gate_cols((params["bih_b"] + params["bhh_b"]).reshape(1, 4 * H).astype(f32))
    b_big = jnp.concatenate(
        [blk for pair in zip(b_f, b_b) for blk in pair], axis=1)      # (1, 8H)

    whh_f = gate_cols(jnp.transpose(params["whh_f"]).astype(f32))    # 4 x (H, H)
    whh_b = gate_cols(jnp.transpose(params["whh_b"]).astype(f32))
    zero = jnp.zeros((H, H), f32)
    cols = []
    for k in range(4):
        cols.append(jnp.concatenate([whh_f[k], zero], axis=0))  # fwd gate cols
        cols.append(jnp.concatenate([zero, whh_b[k]], axis=0))  # bwd gate cols
    whh_big = jnp.concatenate(cols, axis=1)                           # (2H, 8H)

    wlin = jnp.transpose(params["wlin"]).astype(f32)                  # (2H, 1)
    blin = params["blin"].reshape(1, 1).astype(f32)
    return wih_big, b_big, whh_big, wlin, blin


def bilstm_sentiment_forward(text, params):
    """text: (B, T, E) float32.  Returns (B, 1) float32 (matches LSTM.forward)."""
    B, T, E = text.shape
    H = params["whh_f"].shape[1]
    Bp = max(8, -(-B // 8) * 8)   # pad batch to a full sublane tile

    # Layout plumbing (plain JAX): the module's own text.permute(1,0,2), batch
    # padding to a sublane multiple, and flatten to time-major rows (t*Bp + b).
    x = jnp.transpose(text, (1, 0, 2)).astype(jnp.float32)            # (T, B, E)
    x = jnp.pad(x, ((0, 0), (0, Bp - B), (0, 0)))                     # (T, Bp, E)
    x = x.reshape(T * Bp, E)

    wih_big, b_big, whh_big, wlin, blin = _prep_params(params, H)

    vmem = pl.BlockSpec(memory_space=pltpu.MemorySpace.VMEM)
    kernel = functools.partial(_bilstm_head_kernel, seq_len=T, batch_pad=Bp)
    out = pl.pallas_call(
        kernel,
        out_shape=jax.ShapeDtypeStruct((Bp, 1), jnp.float32),
        in_specs=[vmem] * 6,
        out_specs=vmem,
        scratch_shapes=[pltpu.VMEM((T * Bp, 8 * H), jnp.float32)],
        compiler_params=pltpu.CompilerParams(
            vmem_limit_bytes=32 * 1024 * 1024),
    )(x, wih_big, b_big, whh_big, wlin, blin)
    return out[:B]


def _reference_forward(text, params):
    """Pure-JAX reference (mirrors PyTorch nn.LSTM bidirectional semantics)."""
    B, T, E = text.shape
    H = params["whh_f"].shape[1]
    x = jnp.transpose(text, (1, 0, 2))  # (T, B, E)

    def run(x_seq, wih, whh, bih, bhh):
        def step(carry, x_t):
            h, c = carry
            gates = x_t @ wih.T + h @ whh.T + bih + bhh
            i_g = jax.nn.sigmoid(gates[:, 0 * H:1 * H])
            f_g = jax.nn.sigmoid(gates[:, 1 * H:2 * H])
            g_g = jnp.tanh(gates[:, 2 * H:3 * H])
            o_g = jax.nn.sigmoid(gates[:, 3 * H:4 * H])
            c_n = f_g * c + i_g * g_g
            h_n = o_g * jnp.tanh(c_n)
            return (h_n, c_n), None

        h0 = jnp.zeros((B, H), jnp.float32)
        (h_fin, _), _ = lax.scan(step, (h0, h0), x_seq)
        return h_fin

    h_f = run(x, params["wih_f"], params["whh_f"], params["bih_f"], params["bhh_f"])
    h_b = run(x[::-1], params["wih_b"], params["whh_b"], params["bih_b"], params["bhh_b"])
    h_cat = jnp.concatenate([h_f, h_b], axis=1)
    return h_cat @ params["wlin"].T + params["blin"]


def init_params(key, embedding_dim, hidden_dim):
    """Deterministic synthetic init matching nn.LSTM / nn.Linear shapes."""
    H, E = hidden_dim, embedding_dim
    ks = jax.random.split(key, 10)
    u = lambda k, shape, s: jax.random.uniform(k, shape, jnp.float32, -s, s)
    s_lstm = 1.0 / jnp.sqrt(H)
    s_lin = 1.0 / jnp.sqrt(2 * H)
    return {
        "wih_f": u(ks[0], (4 * H, E), s_lstm),
        "whh_f": u(ks[1], (4 * H, H), s_lstm),
        "bih_f": u(ks[2], (4 * H,), s_lstm),
        "bhh_f": u(ks[3], (4 * H,), s_lstm),
        "wih_b": u(ks[4], (4 * H, E), s_lstm),
        "whh_b": u(ks[5], (4 * H, H), s_lstm),
        "bih_b": u(ks[6], (4 * H,), s_lstm),
        "bhh_b": u(ks[7], (4 * H,), s_lstm),
        "wlin": u(ks[8], (1, 2 * H), s_lin),
        "blin": u(ks[9], (1,), s_lin),
    }


if __name__ == "__main__":
    # Small shapes: batch=2, seq=8, embedding_dim=32, hidden_dim=32, n_layers=1
    B, T, E, H = 2, 8, 32, 32
    key = jax.random.PRNGKey(0)
    k_x, k_p = jax.random.split(key)
    text = jax.random.normal(k_x, (B, T, E), jnp.float32)
    params = init_params(k_p, E, H)

    out = bilstm_sentiment_forward(text, params)
    out = jax.block_until_ready(out)
    assert out.shape == (B, 1)

    ref = _reference_forward(text, params)
    assert jnp.allclose(out, ref, atol=1e-4, rtol=1e-4), (out, ref)

    print("KERNEL_OK")
</pallas_src>

<mosaic_0001>
module attributes {stable_mosaic.version = 11 : i64} {
  func.func @_bilstm_head_kernel(%arg0: memref<64x32xf32, #tpu.memory_space<vmem>>, %arg1: memref<32x256xf32, #tpu.memory_space<vmem>>, %arg2: memref<1x256xf32, #tpu.memory_space<vmem>>, %arg3: memref<64x256xf32, #tpu.memory_space<vmem>>, %arg4: memref<64x1xf32, #tpu.memory_space<vmem>>, %arg5: memref<1x1xf32, #tpu.memory_space<vmem>>, %arg6: memref<8x1xf32, #tpu.memory_space<vmem>>, %arg7: memref<64x256xf32, #tpu.memory_space<vmem>>) attributes {dimension_semantics = [], scalar_prefetch = 0 : i64, scratch_operands = 1 : i64, tpu.core_type = #tpu.core_type<tc>} {
    %c0 = arith.constant 0 : index
    %c0_0 = arith.constant 0 : index
    %0 = vector.load %arg0[%c0, %c0_0] : memref<64x32xf32, #tpu.memory_space<vmem>>, vector<64x32xf32>
    %c0_1 = arith.constant 0 : index
    %c0_2 = arith.constant 0 : index
    %1 = vector.load %arg1[%c0_1, %c0_2] : memref<32x256xf32, #tpu.memory_space<vmem>>, vector<32x256xf32>
    %cst = arith.constant dense<0.000000e+00> : vector<64x256xf32>
    %2 = tpu.matmul %0, %1, %cst {dimension_numbers = #tpu.dot_dimension_numbers<[1], [0], [0], [1], [0, 0, 1, 1], [], []>} : vector<64x32xf32>, vector<32x256xf32>, vector<64x256xf32> -> vector<64x256xf32>
    %c0_3 = arith.constant 0 : index
    %c0_4 = arith.constant 0 : index
    %3 = vector.load %arg2[%c0_3, %c0_4] : memref<1x256xf32, #tpu.memory_space<vmem>>, vector<1x256xf32>
    %4 = vector.broadcast %3 : vector<1x256xf32> to vector<64x256xf32>
    %5 = arith.addf %2, %4 : vector<64x256xf32>
    %c0_5 = arith.constant 0 : index
    %c0_6 = arith.constant 0 : index
    %6 = vector.load %arg7[%c0_5, %c0_6] : memref<64x256xf32, #tpu.memory_space<vmem>>, vector<64x256xf32>
    tpu.vector_store %arg7[%c0_5, %c0_6], %5 {strides = array<i32>} : memref<64x256xf32, #tpu.memory_space<vmem>>, vector<64x256xf32>,
    %7 = tpu.iota {dimensions = array<i32: 1>} : vector<8x256xi32>
    %c64_i32 = arith.constant 64 : i32
    %c0_i32 = arith.constant 0 : i32
    %8 = arith.cmpi eq, %c64_i32, %c0_i32 : i32
    %c1_i32 = arith.constant 1 : i32
    %9 = arith.select %8, %c1_i32, %c64_i32 : i32
    %10 = vector.broadcast %9 : i32 to vector<8x256xi32>
    %11 = arith.remsi %7, %10 : vector<8x256xi32>
    %c0_i32_7 = arith.constant 0 : i32
    %12 = vector.broadcast %c0_i32_7 : i32 to vector<8x256xi32>
    %13 = arith.cmpi ne, %11, %12 : vector<8x256xi32>
    %c0_i32_8 = arith.constant 0 : i32
    %14 = vector.broadcast %c0_i32_8 : i32 to vector<8x256xi32>
    %15 = arith.cmpi slt, %11, %14 : vector<8x256xi32>
    %c0_i32_9 = arith.constant 0 : i32
    %16 = arith.cmpi slt, %9, %c0_i32_9 : i32
    %17 = vector.broadcast %16 : i1 to vector<8x256xi1>
    %18 = vector.broadcast %17 : vector<8x256xi1> to vector<8x256xi1>
    %19 = arith.xori %15, %18 : vector<8x256xi1>
    %20 = arith.andi %19, %13 : vector<8x256xi1>
    %21 = vector.broadcast %9 : i32 to vector<8x256xi32>
    %22 = arith.addi %11, %21 : vector<8x256xi32>
    %23 = arith.select %20, %22, %11 : vector<8x256xi1>, vector<8x256xi32>
    %c32_i32 = arith.constant 32 : i32
    %24 = vector.broadcast %c32_i32 : i32 to vector<8x256xi32>
    %25 = arith.cmpi slt, %23, %24 : vector<8x256xi32>
    %c128_i32 = arith.constant 128 : i32
    %26 = vector.broadcast %c128_i32 : i32 to vector<8x256xi32>
    %27 = arith.cmpi sge, %7, %26 : vector<8x256xi32>
    %c192_i32 = arith.constant 192 : i32
    %28 = vector.broadcast %c192_i32 : i32 to vector<8x256xi32>
    %29 = arith.cmpi slt, %7, %28 : vector<8x256xi32>
    %30 = arith.andi %27, %29 : vector<8x256xi1>
    %cst_10 = arith.constant 0.000000e+00 : f32
    %31 = vector.broadcast %cst_10 : f32 to vector<8x64xf32>
    %cst_11 = arith.constant 0.000000e+00 : f32
    %32 = vector.broadcast %cst_11 : f32 to vector<8x64xf32>
    %c0_i32_12 = arith.constant 0 : i32
    %c8_i32 = arith.constant 8 : i32
    %33 = arith.muli %c0_i32_12, %c8_i32 : i32
    %34 = tpu.assume_multiple %33, 8 : i32
    %c7_i32 = arith.constant 7 : i32
    %35 = arith.subi %c7_i32, %c0_i32_12 : i32
    %c8_i32_13 = arith.constant 8 : i32
    %36 = arith.muli %35, %c8_i32_13 : i32
    %37 = tpu.assume_multiple %36, 8 : i32
    %38 = arith.index_cast %34 : i32 to index
    %c0_14 = arith.constant 0 : index
    %39 = vector.load %arg7[%38, %c0_14] : memref<64x256xf32, #tpu.memory_space<vmem>>, vector<8x256xf32>
    %40 = arith.index_cast %37 : i32 to index
    %c0_15 = arith.constant 0 : index
    %41 = vector.load %arg7[%40, %c0_15] : memref<64x256xf32, #tpu.memory_space<vmem>>, vector<8x256xf32>
    %42 = arith.select %25, %39, %41 : vector<8x256xi1>, vector<8x256xf32>
    %c0_16 = arith.constant 0 : index
    %c0_17 = arith.constant 0 : index
    %43 = vector.load %arg3[%c0_16, %c0_17] : memref<64x256xf32, #tpu.memory_space<vmem>>, vector<64x256xf32>
    %cst_18 = arith.constant dense<0.000000e+00> : vector<8x256xf32>
    %44 = tpu.matmul %31, %43, %cst_18 {dimension_numbers = #tpu.dot_dimension_numbers<[1], [0], [0], [1], [0, 0, 1, 1], [], []>} : vector<8x64xf32>, vector<64x256xf32>, vector<8x256xf32> -> vector<8x256xf32>
    %45 = arith.addf %42, %44 : vector<8x256xf32>
    %46 = math.tanh %45 : vector<8x256xf32>
    %cst_19 = arith.constant 5.000000e-01 : f32
    %47 = vector.broadcast %cst_19 : f32 to vector<8x256xf32>
    %48 = arith.mulf %47, %46 : vector<8x256xf32>
    %cst_20 = arith.constant 5.000000e-01 : f32
    %49 = vector.broadcast %cst_20 : f32 to vector<8x256xf32>
    %50 = arith.addf %48, %49 : vector<8x256xf32>
    %51 = arith.select %30, %46, %50 : vector<8x256xi1>, vector<8x256xf32>
    %52 = vector.extract_strided_slice %51 {offsets = [0, 0], sizes = [8, 64], strides = [1, 1]} : vector<8x256xf32> to vector<8x64xf32>
    %53 = vector.extract_strided_slice %51 {offsets = [0, 64], sizes = [8, 64], strides = [1, 1]} : vector<8x256xf32> to vector<8x64xf32>
    %54 = vector.extract_strided_slice %51 {offsets = [0, 128], sizes = [8, 64], strides = [1, 1]} : vector<8x256xf32> to vector<8x64xf32>
    %55 = vector.extract_strided_slice %51 {offsets = [0, 192], sizes = [8, 64], strides = [1, 1]} : vector<8x256xf32> to vector<8x64xf32>
    %56 = arith.mulf %53, %32 : vector<8x64xf32>
    %57 = arith.mulf %52, %54 : vector<8x64xf32>
    %58 = arith.addf %56, %57 : vector<8x64xf32>
    %59 = math.tanh %58 : vector<8x64xf32>
    %60 = arith.mulf %55, %59 : vector<8x64xf32>
    %c1_i32_21 = arith.constant 1 : i32
    %c8_i32_22 = arith.constant 8 : i32
    %61 = arith.muli %c1_i32_21, %c8_i32_22 : i32
    %62 = tpu.assume_multiple %61, 8 : i32
    %c7_i32_23 = arith.constant 7 : i32
    %63 = arith.subi %c7_i32_23, %c1_i32_21 : i32
    %c8_i32_24 = arith.constant 8 : i32
    %64 = arith.muli %63, %c8_i32_24 : i32
    %65 = tpu.assume_multiple %64, 8 : i32
    %66 = arith.index_cast %62 : i32 to index
    %c0_25 = arith.constant 0 : index
    %67 = vector.load %arg7[%66, %c0_25] : memref<64x256xf32, #tpu.memory_space<vmem>>, vector<8x256xf32>
    %68 = arith.index_cast %65 : i32 to index
    %c0_26 = arith.constant 0 : index
    %69 = vector.load %arg7[%68, %c0_26] : memref<64x256xf32, #tpu.memory_space<vmem>>, vector<8x256xf32>
    %70 = arith.select %25, %67, %69 : vector<8x256xi1>, vector<8x256xf32>
    %c0_27 = arith.constant 0 : index
    %c0_28 = arith.constant 0 : index
    %71 = vector.load %arg3[%c0_27, %c0_28] : memref<64x256xf32, #tpu.memory_space<vmem>>, vector<64x256xf32>
    %cst_29 = arith.constant dense<0.000000e+00> : vector<8x256xf32>
    %72 = tpu.matmul %60, %71, %cst_29 {dimension_numbers = #tpu.dot_dimension_numbers<[1], [0], [0], [1], [0, 0, 1, 1], [], []>} : vector<8x64xf32>, vector<64x256xf32>, vector<8x256xf32> -> vector<8x256xf32>
    %73 = arith.addf %70, %72 : vector<8x256xf32>
    %74 = math.tanh %73 : vector<8x256xf32>
    %cst_30 = arith.constant 5.000000e-01 : f32
    %75 = vector.broadcast %cst_30 : f32 to vector<8x256xf32>
    %76 = arith.mulf %75, %74 : vector<8x256xf32>
    %cst_31 = arith.constant 5.000000e-01 : f32
    %77 = vector.broadcast %cst_31 : f32 to vector<8x256xf32>
    %78 = arith.addf %76, %77 : vector<8x256xf32>
    %79 = arith.select %30, %74, %78 : vector<8x256xi1>, vector<8x256xf32>
    %80 = vector.extract_strided_slice %79 {offsets = [0, 0], sizes = [8, 64], strides = [1, 1]} : vector<8x256xf32> to vector<8x64xf32>
    %81 = vector.extract_strided_slice %79 {offsets = [0, 64], sizes = [8, 64], strides = [1, 1]} : vector<8x256xf32> to vector<8x64xf32>
    %82 = vector.extract_strided_slice %79 {offsets = [0, 128], sizes = [8, 64], strides = [1, 1]} : vector<8x256xf32> to vector<8x64xf32>
    %83 = vector.extract_strided_slice %79 {offsets = [0, 192], sizes = [8, 64], strides = [1, 1]} : vector<8x256xf32> to vector<8x64xf32>
    %84 = arith.mulf %81, %58 : vector<8x64xf32>
    %85 = arith.mulf %80, %82 : vector<8x64xf32>
    %86 = arith.addf %84, %85 : vector<8x64xf32>
    %87 = math.tanh %86 : vector<8x64xf32>
    %88 = arith.mulf %83, %87 : vector<8x64xf32>
    %c2_i32 = arith.constant 2 : i32
    %c8_i32_32 = arith.constant 8 : i32
    %89 = arith.muli %c2_i32, %c8_i32_32 : i32
    %90 = tpu.assume_multiple %89, 8 : i32
    %c7_i32_33 = arith.constant 7 : i32
    %91 = arith.subi %c7_i32_33, %c2_i32 : i32
    %c8_i32_34 = arith.constant 8 : i32
    %92 = arith.muli %91, %c8_i32_34 : i32
    %93 = tpu.assume_multiple %92, 8 : i32
    %94 = arith.index_cast %90 : i32 to index
    %c0_35 = arith.constant 0 : index
    %95 = vector.load %arg7[%94, %c0_35] : memref<64x256xf32, #tpu.memory_space<vmem>>, vector<8x256xf32>
    %96 = arith.index_cast %93 : i32 to index
    %c0_36 = arith.constant 0 : index
    %97 = vector.load %arg7[%96, %c0_36] : memref<64x256xf32, #tpu.memory_space<vmem>>, vector<8x256xf32>
    %98 = arith.select %25, %95, %97 : vector<8x256xi1>, vector<8x256xf32>
    %c0_37 = arith.constant 0 : index
    %c0_38 = arith.constant 0 : index
    %99 = vector.load %arg3[%c0_37, %c0_38] : memref<64x256xf32, #tpu.memory_space<vmem>>, vector<64x256xf32>
    %cst_39 = arith.constant dense<0.000000e+00> : vector<8x256xf32>
    %100 = tpu.matmul %88, %99, %cst_39 {dimension_numbers = #tpu.dot_dimension_numbers<[1], [0], [0], [1], [0, 0, 1, 1], [], []>} : vector<8x64xf32>, vector<64x256xf32>, vector<8x256xf32> -> vector<8x256xf32>
    %101 = arith.addf %98, %100 : vector<8x256xf32>
    %102 = math.tanh %101 : vector<8x256xf32>
    %cst_40 = arith.constant 5.000000e-01 : f32
    %103 = vector.broadcast %cst_40 : f32 to vector<8x256xf32>
    %104 = arith.mulf %103, %102 : vector<8x256xf32>
    %cst_41 = arith.constant 5.000000e-01 : f32
    %105 = vector.broadcast %cst_41 : f32 to vector<8x256xf32>
    %106 = arith.addf %104, %105 : vector<8x256xf32>
    %107 = arith.select %30, %102, %106 : vector<8x256xi1>, vector<8x256xf32>
    %108 = vector.extract_strided_slice %107 {offsets = [0, 0], sizes = [8, 64], strides = [1, 1]} : vector<8x256xf32> to vector<8x64xf32>
    %109 = vector.extract_strided_slice %107 {offsets = [0, 64], sizes = [8, 64], strides = [1, 1]} : vector<8x256xf32> to vector<8x64xf32>
    %110 = vector.extract_strided_slice %107 {offsets = [0, 128], sizes = [8, 64], strides = [1, 1]} : vector<8x256xf32> to vector<8x64xf32>
    %111 = vector.extract_strided_slice %107 {offsets = [0, 192], sizes = [8, 64], strides = [1, 1]} : vector<8x256xf32> to vector<8x64xf32>
    %112 = arith.mulf %109, %86 : vector<8x64xf32>
    %113 = arith.mulf %108, %110 : vector<8x64xf32>
    %114 = arith.addf %112, %113 : vector<8x64xf32>
    %115 = math.tanh %114 : vector<8x64xf32>
    %116 = arith.mulf %111, %115 : vector<8x64xf32>
    %c3_i32 = arith.constant 3 : i32
    %c8_i32_42 = arith.constant 8 : i32
    %117 = arith.muli %c3_i32, %c8_i32_42 : i32
    %118 = tpu.assume_multiple %117, 8 : i32
    %c7_i32_43 = arith.constant 7 : i32
    %119 = arith.subi %c7_i32_43, %c3_i32 : i32
    %c8_i32_44 = arith.constant 8 : i32
    %120 = arith.muli %119, %c8_i32_44 : i32
    %121 = tpu.assume_multiple %120, 8 : i32
    %122 = arith.index_cast %118 : i32 to index
    %c0_45 = arith.constant 0 : index
    %123 = vector.load %arg7[%122, %c0_45] : memref<64x256xf32, #tpu.memory_space<vmem>>, vector<8x256xf32>
    %124 = arith.index_cast %121 : i32 to index
    %c0_46 = arith.constant 0 : index
    %125 = vector.load %arg7[%124, %c0_46] : memref<64x256xf32, #tpu.memory_space<vmem>>, vector<8x256xf32>
    %126 = arith.select %25, %123, %125 : vector<8x256xi1>, vector<8x256xf32>
    %c0_47 = arith.constant 0 : index
    %c0_48 = arith.constant 0 : index
    %127 = vector.load %arg3[%c0_47, %c0_48] : memref<64x256xf32, #tpu.memory_space<vmem>>, vector<64x256xf32>
    %cst_49 = arith.constant dense<0.000000e+00> : vector<8x256xf32>
    %128 = tpu.matmul %116, %127, %cst_49 {dimension_numbers = #tpu.dot_dimension_numbers<[1], [0], [0], [1], [0, 0, 1, 1], [], []>} : vector<8x64xf32>, vector<64x256xf32>, vector<8x256xf32> -> vector<8x256xf32>
    %129 = arith.addf %126, %128 : vector<8x256xf32>
    %130 = math.tanh %129 : vector<8x256xf32>
    %cst_50 = arith.constant 5.000000e-01 : f32
    %131 = vector.broadcast %cst_50 : f32 to vector<8x256xf32>
    %132 = arith.mulf %131, %130 : vector<8x256xf32>
    %cst_51 = arith.constant 5.000000e-01 : f32
    %133 = vector.broadcast %cst_51 : f32 to vector<8x256xf32>
    %134 = arith.addf %132, %133 : vector<8x256xf32>
    %135 = arith.select %30, %130, %134 : vector<8x256xi1>, vector<8x256xf32>
    %136 = vector.extract_strided_slice %135 {offsets = [0, 0], sizes = [8, 64], strides = [1, 1]} : vector<8x256xf32> to vector<8x64xf32>
    %137 = vector.extract_strided_slice %135 {offsets = [0, 64], sizes = [8, 64], strides = [1, 1]} : vector<8x256xf32> to vector<8x64xf32>
    %138 = vector.extract_strided_slice %135 {offsets = [0, 128], sizes = [8, 64], strides = [1, 1]} : vector<8x256xf32> to vector<8x64xf32>
    %139 = vector.extract_strided_slice %135 {offsets = [0, 192], sizes = [8, 64], strides = [1, 1]} : vector<8x256xf32> to vector<8x64xf32>
    %140 = arith.mulf %137, %114 : vector<8x64xf32>
    %141 = arith.mulf %136, %138 : vector<8x64xf32>
    %142 = arith.addf %140, %141 : vector<8x64xf32>
    %143 = math.tanh %142 : vector<8x64xf32>
    %144 = arith.mulf %139, %143 : vector<8x64xf32>
    %c4_i32 = arith.constant 4 : i32
    %c8_i32_52 = arith.constant 8 : i32
    %145 = arith.muli %c4_i32, %c8_i32_52 : i32
    %146 = tpu.assume_multiple %145, 8 : i32
    %c7_i32_53 = arith.constant 7 : i32
    %147 = arith.subi %c7_i32_53, %c4_i32 : i32
    %c8_i32_54 = arith.constant 8 : i32
    %148 = arith.muli %147, %c8_i32_54 : i32
    %149 = tpu.assume_multiple %148, 8 : i32
    %150 = arith.index_cast %146 : i32 to index
    %c0_55 = arith.constant 0 : index
    %151 = vector.load %arg7[%150, %c0_55] : memref<64x256xf32, #tpu.memory_space<vmem>>, vector<8x256xf32>
    %152 = arith.index_cast %149 : i32 to index
    %c0_56 = arith.constant 0 : index
    %153 = vector.load %arg7[%152, %c0_56] : memref<64x256xf32, #tpu.memory_space<vmem>>, vector<8x256xf32>
    %154 = arith.select %25, %151, %153 : vector<8x256xi1>, vector<8x256xf32>
    %c0_57 = arith.constant 0 : index
    %c0_58 = arith.constant 0 : index
    %155 = vector.load %arg3[%c0_57, %c0_58] : memref<64x256xf32, #tpu.memory_space<vmem>>, vector<64x256xf32>
    %cst_59 = arith.constant dense<0.000000e+00> : vector<8x256xf32>
    %156 = tpu.matmul %144, %155, %cst_59 {dimension_numbers = #tpu.dot_dimension_numbers<[1], [0], [0], [1], [0, 0, 1, 1], [], []>} : vector<8x64xf32>, vector<64x256xf32>, vector<8x256xf32> -> vector<8x256xf32>
    %157 = arith.addf %154, %156 : vector<8x256xf32>
    %158 = math.tanh %157 : vector<8x256xf32>
    %cst_60 = arith.constant 5.000000e-01 : f32
    %159 = vector.broadcast %cst_60 : f32 to vector<8x256xf32>
    %160 = arith.mulf %159, %158 : vector<8x256xf32>
    %cst_61 = arith.constant 5.000000e-01 : f32
    %161 = vector.broadcast %cst_61 : f32 to vector<8x256xf32>
    %162 = arith.addf %160, %161 : vector<8x256xf32>
    %163 = arith.select %30, %158, %162 : vector<8x256xi1>, vector<8x256xf32>
    %164 = vector.extract_strided_slice %163 {offsets = [0, 0], sizes = [8, 64], strides = [1, 1]} : vector<8x256xf32> to vector<8x64xf32>
    %165 = vector.extract_strided_slice %163 {offsets = [0, 64], sizes = [8, 64], strides = [1, 1]} : vector<8x256xf32> to vector<8x64xf32>
    %166 = vector.extract_strided_slice %163 {offsets = [0, 128], sizes = [8, 64], strides = [1, 1]} : vector<8x256xf32> to vector<8x64xf32>
    %167 = vector.extract_strided_slice %163 {offsets = [0, 192], sizes = [8, 64], strides = [1, 1]} : vector<8x256xf32> to vector<8x64xf32>
    %168 = arith.mulf %165, %142 : vector<8x64xf32>
    %169 = arith.mulf %164, %166 : vector<8x64xf32>
    %170 = arith.addf %168, %169 : vector<8x64xf32>
    %171 = math.tanh %170 : vector<8x64xf32>
    %172 = arith.mulf %167, %171 : vector<8x64xf32>
    %c5_i32 = arith.constant 5 : i32
    %c8_i32_62 = arith.constant 8 : i32
    %173 = arith.muli %c5_i32, %c8_i32_62 : i32
    %174 = tpu.assume_multiple %173, 8 : i32
    %c7_i32_63 = arith.constant 7 : i32
    %175 = arith.subi %c7_i32_63, %c5_i32 : i32
    %c8_i32_64 = arith.constant 8 : i32
    %176 = arith.muli %175, %c8_i32_64 : i32
    %177 = tpu.assume_multiple %176, 8 : i32
    %178 = arith.index_cast %174 : i32 to index
    %c0_65 = arith.constant 0 : index
    %179 = vector.load %arg7[%178, %c0_65] : memref<64x256xf32, #tpu.memory_space<vmem>>, vector<8x256xf32>
    %180 = arith.index_cast %177 : i32 to index
    %c0_66 = arith.constant 0 : index
    %181 = vector.load %arg7[%180, %c0_66] : memref<64x256xf32, #tpu.memory_space<vmem>>, vector<8x256xf32>
    %182 = arith.select %25, %179, %181 : vector<8x256xi1>, vector<8x256xf32>
    %c0_67 = arith.constant 0 : index
    %c0_68 = arith.constant 0 : index
    %183 = vector.load %arg3[%c0_67, %c0_68] : memref<64x256xf32, #tpu.memory_space<vmem>>, vector<64x256xf32>
    %cst_69 = arith.constant dense<0.000000e+00> : vector<8x256xf32>
    %184 = tpu.matmul %172, %183, %cst_69 {dimension_numbers = #tpu.dot_dimension_numbers<[1], [0], [0], [1], [0, 0, 1, 1], [], []>} : vector<8x64xf32>, vector<64x256xf32>, vector<8x256xf32> -> vector<8x256xf32>
    %185 = arith.addf %182, %184 : vector<8x256xf32>
    %186 = math.tanh %185 : vector<8x256xf32>
    %cst_70 = arith.constant 5.000000e-01 : f32
    %187 = vector.broadcast %cst_70 : f32 to vector<8x256xf32>
    %188 = arith.mulf %187, %186 : vector<8x256xf32>
    %cst_71 = arith.constant 5.000000e-01 : f32
    %189 = vector.broadcast %cst_71 : f32 to vector<8x256xf32>
    %190 = arith.addf %188, %189 : vector<8x256xf32>
    %191 = arith.select %30, %186, %190 : vector<8x256xi1>, vector<8x256xf32>
    %192 = vector.extract_strided_slice %191 {offsets = [0, 0], sizes = [8, 64], strides = [1, 1]} : vector<8x256xf32> to vector<8x64xf32>
    %193 = vector.extract_strided_slice %191 {offsets = [0, 64], sizes = [8, 64], strides = [1, 1]} : vector<8x256xf32> to vector<8x64xf32>
    %194 = vector.extract_strided_slice %191 {offsets = [0, 128], sizes = [8, 64], strides = [1, 1]} : vector<8x256xf32> to vector<8x64xf32>
    %195 = vector.extract_strided_slice %191 {offsets = [0, 192], sizes = [8, 64], strides = [1, 1]} : vector<8x256xf32> to vector<8x64xf32>
    %196 = arith.mulf %193, %170 : vector<8x64xf32>
    %197 = arith.mulf %192, %194 : vector<8x64xf32>
    %198 = arith.addf %196, %197 : vector<8x64xf32>
    %199 = math.tanh %198 : vector<8x64xf32>
    %200 = arith.mulf %195, %199 : vector<8x64xf32>
    %c6_i32 = arith.constant 6 : i32
    %c8_i32_72 = arith.constant 8 : i32
    %201 = arith.muli %c6_i32, %c8_i32_72 : i32
    %202 = tpu.assume_multiple %201, 8 : i32
    %c7_i32_73 = arith.constant 7 : i32
    %203 = arith.subi %c7_i32_73, %c6_i32 : i32
    %c8_i32_74 = arith.constant 8 : i32
    %204 = arith.muli %203, %c8_i32_74 : i32
    %205 = tpu.assume_multiple %204, 8 : i32
    %206 = arith.index_cast %202 : i32 to index
    %c0_75 = arith.constant 0 : index
    %207 = vector.load %arg7[%206, %c0_75] : memref<64x256xf32, #tpu.memory_space<vmem>>, vector<8x256xf32>
    %208 = arith.index_cast %205 : i32 to index
    %c0_76 = arith.constant 0 : index
    %209 = vector.load %arg7[%208, %c0_76] : memref<64x256xf32, #tpu.memory_space<vmem>>, vector<8x256xf32>
    %210 = arith.select %25, %207, %209 : vector<8x256xi1>, vector<8x256xf32>
    %c0_77 = arith.constant 0 : index
    %c0_78 = arith.constant 0 : index
    %211 = vector.load %arg3[%c0_77, %c0_78] : memref<64x256xf32, #tpu.memory_space<vmem>>, vector<64x256xf32>
    %cst_79 = arith.constant dense<0.000000e+00> : vector<8x256xf32>
    %212 = tpu.matmul %200, %211, %cst_79 {dimension_numbers = #tpu.dot_dimension_numbers<[1], [0], [0], [1], [0, 0, 1, 1], [], []>} : vector<8x64xf32>, vector<64x256xf32>, vector<8x256xf32> -> vector<8x256xf32>
    %213 = arith.addf %210, %212 : vector<8x256xf32>
    %214 = math.tanh %213 : vector<8x256xf32>
    %cst_80 = arith.constant 5.000000e-01 : f32
    %215 = vector.broadcast %cst_80 : f32 to vector<8x256xf32>
    %216 = arith.mulf %215, %214 : vector<8x256xf32>
    %cst_81 = arith.constant 5.000000e-01 : f32
    %217 = vector.broadcast %cst_81 : f32 to vector<8x256xf32>
    %218 = arith.addf %216, %217 : vector<8x256xf32>
    %219 = arith.select %30, %214, %218 : vector<8x256xi1>, vector<8x256xf32>
    %220 = vector.extract_strided_slice %219 {offsets = [0, 0], sizes = [8, 64], strides = [1, 1]} : vector<8x256xf32> to vector<8x64xf32>
    %221 = vector.extract_strided_slice %219 {offsets = [0, 64], sizes = [8, 64], strides = [1, 1]} : vector<8x256xf32> to vector<8x64xf32>
    %222 = vector.extract_strided_slice %219 {offsets = [0, 128], sizes = [8, 64], strides = [1, 1]} : vector<8x256xf32> to vector<8x64xf32>
    %223 = vector.extract_strided_slice %219 {offsets = [0, 192], sizes = [8, 64], strides = [1, 1]} : vector<8x256xf32> to vector<8x64xf32>
    %224 = arith.mulf %221, %198 : vector<8x64xf32>
    %225 = arith.mulf %220, %222 : vector<8x64xf32>
    %226 = arith.addf %224, %225 : vector<8x64xf32>
    %227 = math.tanh %226 : vector<8x64xf32>
    %228 = arith.mulf %223, %227 : vector<8x64xf32>
    %c7_i32_82 = arith.constant 7 : i32
    %c8_i32_83 = arith.constant 8 : i32
    %229 = arith.muli %c7_i32_82, %c8_i32_83 : i32
    %230 = tpu.assume_multiple %229, 8 : i32
    %c7_i32_84 = arith.constant 7 : i32
    %231 = arith.subi %c7_i32_84, %c7_i32_82 : i32
    %c8_i32_85 = arith.constant 8 : i32
    %232 = arith.muli %231, %c8_i32_85 : i32
    %233 = tpu.assume_multiple %232, 8 : i32
    %234 = arith.index_cast %230 : i32 to index
    %c0_86 = arith.constant 0 : index
    %235 = vector.load %arg7[%234, %c0_86] : memref<64x256xf32, #tpu.memory_space<vmem>>, vector<8x256xf32>
    %236 = arith.index_cast %233 : i32 to index
    %c0_87 = arith.constant 0 : index
    %237 = vector.load %arg7[%236, %c0_87] : memref<64x256xf32, #tpu.memory_space<vmem>>, vector<8x256xf32>
    %238 = arith.select %25, %235, %237 : vector<8x256xi1>, vector<8x256xf32>
    %c0_88 = arith.constant 0 : index
    %c0_89 = arith.constant 0 : index
    %239 = vector.load %arg3[%c0_88, %c0_89] : memref<64x256xf32, #tpu.memory_space<vmem>>, vector<64x256xf32>
    %cst_90 = arith.constant dense<0.000000e+00> : vector<8x256xf32>
    %240 = tpu.matmul %228, %239, %cst_90 {dimension_numbers = #tpu.dot_dimension_numbers<[1], [0], [0], [1], [0, 0, 1, 1], [], []>} : vector<8x64xf32>, vector<64x256xf32>, vector<8x256xf32> -> vector<8x256xf32>
    %241 = arith.addf %238, %240 : vector<8x256xf32>
    %242 = math.tanh %241 : vector<8x256xf32>
    %cst_91 = arith.constant 5.000000e-01 : f32
    %243 = vector.broadcast %cst_91 : f32 to vector<8x256xf32>
    %244 = arith.mulf %243, %242 : vector<8x256xf32>
    %cst_92 = arith.constant 5.000000e-01 : f32
    %245 = vector.broadcast %cst_92 : f32 to vector<8x256xf32>
    %246 = arith.addf %244, %245 : vector<8x256xf32>
    %247 = arith.select %30, %242, %246 : vector<8x256xi1>, vector<8x256xf32>
    %248 = vector.extract_strided_slice %247 {offsets = [0, 0], sizes = [8, 64], strides = [1, 1]} : vector<8x256xf32> to vector<8x64xf32>
    %249 = vector.extract_strided_slice %247 {offsets = [0, 64], sizes = [8, 64], strides = [1, 1]} : vector<8x256xf32> to vector<8x64xf32>
    %250 = vector.extract_strided_slice %247 {offsets = [0, 128], sizes = [8, 64], strides = [1, 1]} : vector<8x256xf32> to vector<8x64xf32>
    %251 = vector.extract_strided_slice %247 {offsets = [0, 192], sizes = [8, 64], strides = [1, 1]} : vector<8x256xf32> to vector<8x64xf32>
    %252 = arith.mulf %249, %226 : vector<8x64xf32>
    %253 = arith.mulf %248, %250 : vector<8x64xf32>
    %254 = arith.addf %252, %253 : vector<8x64xf32>
    %255 = math.tanh %254 : vector<8x64xf32>
    %256 = arith.mulf %251, %255 : vector<8x64xf32>
    %c8_i32_93 = arith.constant 8 : i32
    %c0_94 = arith.constant 0 : index
    %c0_95 = arith.constant 0 : index
    %257 = vector.load %arg4[%c0_94, %c0_95] : memref<64x1xf32, #tpu.memory_space<vmem>>, vector<64x1xf32>
    %cst_96 = arith.constant dense<0.000000e+00> : vector<8x1xf32>
    %258 = tpu.matmul %256, %257, %cst_96 {dimension_numbers = #tpu.dot_dimension_numbers<[1], [0], [0], [1], [0, 0, 1, 1], [], []>} : vector<8x64xf32>, vector<64x1xf32>, vector<8x1xf32> -> vector<8x1xf32>
    %c0_97 = arith.constant 0 : index
    %c0_98 = arith.constant 0 : index
    %259 = vector.load %arg5[%c0_97, %c0_98] : memref<1x1xf32, #tpu.memory_space<vmem>>, vector<1x1xf32>
    %260 = vector.broadcast %259 : vector<1x1xf32> to vector<8x1xf32>
    %261 = arith.addf %258, %260 : vector<8x1xf32>
    %c0_99 = arith.constant 0 : index
    %c0_100 = arith.constant 0 : index
    %262 = vector.load %arg6[%c0_99, %c0_100] : memref<8x1xf32, #tpu.memory_space<vmem>>, vector<8x1xf32>
    tpu.vector_store %arg6[%c0_99, %c0_100], %261 {strides = array<i32>} : memref<8x1xf32, #tpu.memory_space<vmem>>, vector<8x1xf32>,
    return
  }
}

</mosaic_0001>

<llo_original>
// kernel: tpu_custom_call.1
$region0: #{tpu_custom_call.1}
  #allocation0 [shape = 'u32[]', space=smem, size = 0x4, offset = 0x4, fixed_abs, tag = 'smem constant byte address 0x4 - core index']
  #allocation1 [shape = 'u32[144,128]{1,0:T(1,128)}', space=vmem, size = 0x12000, scoped, tag = 'internal scratch']
  #allocation2 [shape = 'f32[64,256]{1,0:T(8,128)}', space=vmem, size = 0x10000, scoped, tag = 'scratch operand']
  #allocation3 [shape = 'f32[1,1]{1,0:T(1,128)S(1)}', space=vmem, size = 0x200, scoped, tag = 'scoped memory for tpu_custom_call.1']
  %s0 = inlined_call_operand.vmem [shape: f32[64,32], index: 0, kind: input, shape index: {}]
  %s1 = inlined_call_operand.hbm [shape: f32[32,256], index: 1, kind: input, shape index: {}]
  %s2 = inlined_call_operand.vmem [shape: f32[1,256], index: 2, kind: input, shape index: {}]
  %s3 = inlined_call_operand.vmem [shape: f32[64,256], index: 3, kind: input, shape index: {}]
  %s4 = inlined_call_operand.vmem [shape: f32[64,1], index: 4, kind: input, shape index: {}]
  %s5 = inlined_call_operand.<no memory space> [shape: f32[1,1], index: 5, kind: input, shape index: {}]
  %s6 = inlined_call_operand.vmem [shape: f32[8,1], index: 6, kind: output, shape index: {}]
  %s7 = sld [smem:[#allocation0]]
  $region38: #{tpu_custom_call.1} parent=0
    _
  %s9 = ssub.s32 1, %s7
  %s10 = scalar_select 0, %s9, %s7
  %v11 = vstv %s5
  %12 = vst [vmem:[#allocation3] sm:$0x1] %v11
  $region1: #{tpu_custom_call.1} parent=0
    #allocation4 [shape = 'u8[32768]{0}', space=vmem, size = 0x8000, scoped, tag = 'input window, operand 1, single buffered']
    #allocation5 [shape = 's32[1]{0}', space=sflag, size = 0x4, scoped, tag = 'scoped memory for tpu_custom_call.1']
    %13 = vsyncpa [#allocation5], 0
    // Predicated region
    $region2: #{tpu_custom_call.1} parent=1 // pred_check
      _
    $region3: #{tpu_custom_call.1} parent=1 // pred_check_branch
      %15 = sbr.rel (0) target = $region5
    $region4: #{tpu_custom_call.1} parent=1 // pred_region
      _
    $region5: #{tpu_custom_call.1} parent=1 // pred_fallthru
      _
    // Predicated region
    $region6: #{tpu_custom_call.1} parent=1 // pred_check
      _
    $region7: #{tpu_custom_call.1} parent=1 // pred_check_branch
      %17 = sbr.rel (0) target = $region9
    $region8: #{tpu_custom_call.1} parent=1 // pred_region
      %s19 = ssub.s32 1024, 1024
      %20 = vsyncadd [#allocation5], %s19
      %s21 = sshll.u32 [#allocation4], 4
      %s22 = int_to_ptr.vmem [resolvable:$true] %s21
      %27 = dma.hbm_to_vmem [thread:$0]  %s1, 1024, %s22, [#allocation5], 256, 256, 16
    $region9: #{tpu_custom_call.1} parent=1 // pred_fallthru
      _
    // Predicated region
    $region10: #{tpu_custom_call.1} parent=1 // pred_check
      _
    $region11: #{tpu_custom_call.1} parent=1 // pred_check_branch
      %29 = sbr.rel (0) target = $region13
    $region12: #{tpu_custom_call.1} parent=1 // pred_region
      _
    $region13: #{tpu_custom_call.1} parent=1 // pred_fallthru
      _
    // Predicated region
    $region14: #{tpu_custom_call.1} parent=1 // pred_check
      _
    $region15: #{tpu_custom_call.1} parent=1 // pred_check_branch
      %31 = sbr.rel (0) target = $region17
    $region16: #{tpu_custom_call.1} parent=1 // pred_region
      _
    $region17: #{tpu_custom_call.1} parent=1 // pred_fallthru
      _
    // Predicated region
    $region18: #{tpu_custom_call.1} parent=1 // pred_check
      _
    $region19: #{tpu_custom_call.1} parent=1 // pred_check_branch
      %33 = sbr.rel (0) target = $region21
    $region20: #{tpu_custom_call.1} parent=1 // pred_region
      _
    $region21: #{tpu_custom_call.1} parent=1 // pred_fallthru
      _
    // Predicated region
    $region22: #{tpu_custom_call.1} parent=1 // pred_check
      _
    $region23: #{tpu_custom_call.1} parent=1 // pred_check_branch
      %35 = sbr.rel (0) target = $region25
    $region24: #{tpu_custom_call.1} parent=1 // pred_region
      _
    $region25: #{tpu_custom_call.1} parent=1 // pred_fallthru
      _
    // Predicated region
    $region26: #{tpu_custom_call.1} parent=1 // pred_check
      _
    $region27: #{tpu_custom_call.1} parent=1 // pred_check_branch
      %37 = sbr.rel (0) target = $region29
    $region28: #{tpu_custom_call.1} parent=1 // pred_region
      %38 = dma.done [#allocation5], 1024
    $region29: #{tpu_custom_call.1} parent=1 // pred_fallthru
      _
    %v39 = vld [vmem:[%s0] sm:$0xff]
    %v40 = vld [vmem:[%s0 + $0x8] sm:$0xff]
    %v41 = vld [vmem:[%s0 + $0x10] sm:$0xff]
    %v42 = vld [vmem:[%s0 + $0x18] sm:$0xff]
    %v43 = vld [vmem:[%s0 + $0x20] sm:$0xff]
    %v44 = vld [vmem:[%s0 + $0x28] sm:$0xff]
    %v45 = vld [vmem:[%s0 + $0x30] sm:$0xff]
    %v46 = vld [vmem:[%s0 + $0x38] sm:$0xff]
    %v47 = vld [vmem:[#allocation4] sm:$0xff]
    %v48 = vld [vmem:[#allocation4 + $0x8] sm:$0xff]
    %v49 = vld [vmem:[#allocation4 + $0x10] sm:$0xff]
    %v50 = vld [vmem:[#allocation4 + $0x18] sm:$0xff]
    %v51 = vld [vmem:[#allocation4 + $0x20] sm:$0xff]
    %v52 = vld [vmem:[#allocation4 + $0x28] sm:$0xff]
    %v53 = vld [vmem:[#allocation4 + $0x30] sm:$0xff]
    %v54 = vld [vmem:[#allocation4 + $0x38] sm:$0xff]
    %v55 = vld [vmem:[%s2] sm:$0x3]
    %v57 = vlaneseq
    %v58 = vshrl.u32 %v57, 7
    %v59 = vsub.s32 0, %v58
    %v60 = vrot.slane %v55, %v59
    %v61 = vlaneseq
    %v62 = vshrl.u32 %v61, 7
    %v63 = vsub.s32 1, %v62
    %v64 = vrot.slane %v55, %v63
    %vm67 = vcmask 261120
    %v69 = vsel %vm67, %v39, 0
    %v72 = vsel %vm67, %v40, 0
    %v75 = vsel %vm67, %v41, 0
    %v78 = vsel %vm67, %v42, 0
    %v81 = vsel %vm67, %v43, 0
    %v84 = vsel %vm67, %v44, 0
    %v87 = vsel %vm67, %v45, 0
    %v90 = vsel %vm67, %v46, 0
    %92 = vmatprep.subr.mxu0 0.0
    %93 = vmatpush1.msra.mxu0 0.0
    %94 = vmatprep.subr.mxu0 0.0
    %95 = vmatpush1.msra.mxu0 0.0
    %96 = vmatprep.subr.mxu0 0.0
    %97 = vmatpush1.msra.mxu0 0.0
    %98 = vmatprep.subr.mxu0 0.0
    %99 = vmatpush1.msra.mxu0 0.0
    %100 = vmatprep.subr.mxu0 0.0
    %101 = vmatpush1.msra.mxu0 0.0
    %102 = vmatprep.subr.mxu0 0.0
    %103 = vmatpush1.msra.mxu0 0.0
    %104 = vmatprep.subr.mxu0 0.0
    %105 = vmatpush1.msra.mxu0 0.0
    %106 = vmatprep.subr.mxu0 0.0
    %107 = vmatpush1.msra.mxu0 0.0
    %108 = vmatprep.subr.mxu0 0.0
    %109 = vmatpush1.msra.mxu0 0.0
    %110 = vmatprep.subr.mxu0 0.0
    %111 = vmatpush1.msra.mxu0 0.0
    %112 = vmatprep.subr.mxu0 0.0
    %113 = vmatpush1.msra.mxu0 0.0
    %114 = vmatprep.subr.mxu0 0.0
    %115 = vmatpush1.msra.mxu0 0.0
    %116 = vmatprep.subr.mxu0 %v54
    %117 = vmatpush1.msra.mxu0 %v53
    %118 = vmatprep.subr.mxu0 %v52
    %119 = vmatpush1.msra.mxu0 %v51
    %120 = vmatprep.subr.mxu0 %v50
    %121 = vmatpush1.msra.mxu0 %v49
    %122 = vmatprep.subr.mxu0 %v48
    %123 = vmatpush1.msra.mxu0 %v47
    %124 = vmatprep.subr.mxu0 0.0
    %125 = vmatpush2.msra.mxu0 0.0
    %126 = vmatprep.subr.mxu0 0.0
    %127 = vmatpush2.msra.mxu0 0.0
    %128 = vmatprep.subr.mxu0 0.0
    %129 = vmatpush2.msra.mxu0 0.0
    %130 = vmatprep.subr.mxu0 0.0
    %131 = vmatpush2.msra.mxu0 0.0
    %132 = vmatprep.subr.mxu0 0.0
    %133 = vmatpush2.msra.mxu0 0.0
    %134 = vmatprep.subr.mxu0 0.0
    %135 = vmatpush2.msra.mxu0 0.0
    %136 = vmatprep.subr.mxu0 0.0
    %137 = vmatpush2.msra.mxu0 0.0
    %138 = vmatprep.subr.mxu0 0.0
    %139 = vmatpush2.msra.mxu0 0.0
    %140 = vmatprep.subr.mxu0 0.0
    %141 = vmatpush2.msra.mxu0 0.0
    %142 = vmatprep.subr.mxu0 0.0
    %143 = vmatpush2.msra.mxu0 0.0
    %144 = vmatprep.subr.mxu0 0.0
    %145 = vmatpush2.msra.mxu0 0.0
    %146 = vmatprep.subr.mxu0 0.0
    %147 = vmatpush2.msra.mxu0 0.0
    %148 = vmatprep.subr.mxu0 0.0
    %149 = vmatpush2.msra.mxu0 0.0
    %150 = vmatprep.subr.mxu0 0.0
    %151 = vmatpush2.msra.mxu0 0.0
    %152 = vmatprep.subr.mxu0 0.0
    %153 = vmatpush2.msra.mxu0 0.0
    %154 = vmatprep.subr.mxu0 0.0
    %155 = vmatpush2.msra.mxu0 0.0
    %156 = vmatprep.mubr.f32.mxu0 0.0
    %157 = vmatmul.mubr.f32.gmra.mxu0 %v69
    %v158 = vpop.f32.mrf.mxu0
    %v159 = vadd.f32 %v60, %v158
    %v160 = vpop.f32.mrf.mxu0
    %v161 = vadd.f32 %v64, %v160
    %162 = vmatprep.mubr.f32.mxu0 0.0
    %163 = vmatmul.mubr.f32.gmra.mxu0 %v72
    %v164 = vpop.f32.mrf.mxu0
    %v165 = vadd.f32 %v60, %v164
    %v166 = vpop.f32.mrf.mxu0
    %v167 = vadd.f32 %v64, %v166
    %168 = vmatprep.mubr.f32.mxu0 0.0
    %169 = vmatmul.mubr.f32.gmra.mxu0 %v75
    %v170 = vpop.f32.mrf.mxu0
    %v171 = vadd.f32 %v60, %v170
    %v172 = vpop.f32.mrf.mxu0
    %v173 = vadd.f32 %v64, %v172
    %174 = vmatprep.mubr.f32.mxu0 0.0
    %175 = vmatmul.mubr.f32.gmra.mxu0 %v78
    %v176 = vpop.f32.mrf.mxu0
    %v177 = vadd.f32 %v60, %v176
    %v178 = vpop.f32.mrf.mxu0
    %v179 = vadd.f32 %v64, %v178
    %180 = vmatprep.mubr.f32.mxu0 0.0
    %181 = vmatmul.mubr.f32.gmra.mxu0 %v81
    %v182 = vpop.f32.mrf.mxu0
    %v183 = vadd.f32 %v60, %v182
    %v184 = vpop.f32.mrf.mxu0
    %v185 = vadd.f32 %v64, %v184
    %186 = vmatprep.mubr.f32.mxu0 0.0
    %187 = vmatmul.mubr.f32.gmra.mxu0 %v84
    %v188 = vpop.f32.mrf.mxu0
    %v189 = vadd.f32 %v60, %v188
    %v190 = vpop.f32.mrf.mxu0
    %v191 = vadd.f32 %v64, %v190
    %192 = vmatprep.mubr.f32.mxu0 0.0
    %193 = vmatmul.mubr.f32.gmra.mxu0 %v87
    %v194 = vpop.f32.mrf.mxu0
    %v195 = vadd.f32 %v60, %v194
    %v196 = vpop.f32.mrf.mxu0
    %v197 = vadd.f32 %v64, %v196
    %198 = vmatprep.mubr.f32.mxu0 0.0
    %199 = vmatmul.mubr.f32.gmra.mxu0 %v90
    %v200 = vpop.f32.mrf.mxu0
    %v201 = vadd.f32 %v60, %v200
    %v202 = vpop.f32.mrf.mxu0
    %v203 = vadd.f32 %v64, %v202
    %204 = vdwg.mxu0
    %205 = vst [vmem:[#allocation2] sm:$0xff] %v159
    %206 = vst [vmem:[#allocation2 + $0x8] sm:$0xff] %v161
    %207 = vst [vmem:[#allocation2 + $0x10] sm:$0xff] %v165
    %208 = vst [vmem:[#allocation2 + $0x18] sm:$0xff] %v167
    %209 = vst [vmem:[#allocation2 + $0x20] sm:$0xff] %v171
    %210 = vst [vmem:[#allocation2 + $0x28] sm:$0xff] %v173
    %211 = vst [vmem:[#allocation2 + $0x30] sm:$0xff] %v177
    %212 = vst [vmem:[#allocation2 + $0x38] sm:$0xff] %v179
    %213 = vst [vmem:[#allocation2 + $0x40] sm:$0xff] %v183
    %214 = vst [vmem:[#allocation2 + $0x48] sm:$0xff] %v185
    %215 = vst [vmem:[#allocation2 + $0x50] sm:$0xff] %v189
    %216 = vst [vmem:[#allocation2 + $0x58] sm:$0xff] %v191
    %217 = vst [vmem:[#allocation2 + $0x60] sm:$0xff] %v195
    %218 = vst [vmem:[#allocation2 + $0x68] sm:$0xff] %v197
    %219 = vst [vmem:[#allocation2 + $0x70] sm:$0xff] %v201
    %220 = vst [vmem:[#allocation2 + $0x78] sm:$0xff] %v203
    %v221 = vlaneseq
    %v222 = vand.u32 %v221, 127
    %v223 = vadd.s32 %v222, 128
    %vm224 = vcmp.lt.s32.totalorder %v222, 0
    %v225 = vsub.s32 0, %v222
    %v226 = vsel %vm224, %v225, %v222
    %v227 = vshrl.u32 %v226, 6
    %v228 = vand.u32 %v226, 63
    %v229 = vsub.s32 0, %v228
    %v230 = vsel %vm224, %v229, %v228
    %vm231 = vcmp.lt.s32.totalorder %v223, 0
    %v232 = vsub.s32 0, %v223
    %v233 = vsel %vm231, %v232, %v223
    %v234 = vshrl.u32 %v233, 6
    %v235 = vand.u32 %v233, 63
    %v236 = vsub.s32 0, %v235
    %v237 = vsel %vm231, %v236, %v235
    %vm238 = vcmp.ne.s32.totalorder %v230, 0
    %vm239 = vcmp.ne.s32.totalorder %v237, 0
    %vm240 = vcmp.lt.s32.totalorder %v230, 0
    %vm241 = vcmp.lt.s32.totalorder %v237, 0
    %vm242 = vmand %vm240, %vm238
    %vm243 = vmand %vm241, %vm239
    %v244 = vadd.s32 %v230, 64
    %v245 = vadd.s32 %v237, 64
    %v246 = vsel %vm242, %v244, %v230
    %v247 = vsel %vm243, %v245, %v237
    %vm248 = vcmp.lt.s32.totalorder %v246, 32
    %vm249 = vcmp.lt.s32.totalorder %v247, 32
    %vm250 = vcmp.ge.s32.totalorder %v222, 128
    %vm251 = vcmp.ge.s32.totalorder %v223, 128
    %vm252 = vcmp.lt.s32.totalorder %v222, 192
    %vm253 = vcmp.lt.s32.totalorder %v223, 192
    %vm254 = vmand %vm250, %vm252
    %vm255 = vmand %vm251, %vm253
    %s256 = smul.u32 0, 2
    %s257 = smul.addr %s256, 8
    %s258 = scalar_lea.vmem [#allocation2], %s257
    %v259 = vld [vmem:[%s258] sm:$0xff]
    %v260 = vld [vmem:[%s258 + $0x8] sm:$0xff]
    %s261 = smul.u32 7, 2
    %s262 = smul.addr %s261, 8
    %s263 = scalar_lea.vmem [#allocation2], %s262
    %v264 = vld [vmem:[%s263] sm:$0xff]
    %v265 = vld [vmem:[%s263 + $0x8] sm:$0xff]
    %v266 = vsel %vm248, %v259, %v264
    %v267 = vsel %vm249, %v260, %v265
    %v268 = vld [vmem:[%s3] sm:$0xff]
    %v269 = vld [vmem:[%s3 + $0x8] sm:$0xff]
    %v270 = vld [vmem:[%s3 + $0x10] sm:$0xff]
    %v271 = vld [vmem:[%s3 + $0x18] sm:$0xff]
    %v272 = vld [vmem:[%s3 + $0x20] sm:$0xff]
    %v273 = vld [vmem:[%s3 + $0x28] sm:$0xff]
    %v274 = vld [vmem:[%s3 + $0x30] sm:$0xff]
    %v275 = vld [vmem:[%s3 + $0x38] sm:$0xff]
    %v276 = vld [vmem:[%s3 + $0x40] sm:$0xff]
    %v277 = vld [vmem:[%s3 + $0x48] sm:$0xff]
    %v278 = vld [vmem:[%s3 + $0x50] sm:$0xff]
    %v279 = vld [vmem:[%s3 + $0x58] sm:$0xff]
    %v280 = vld [vmem:[%s3 + $0x60] sm:$0xff]
    %v281 = vld [vmem:[%s3 + $0x68] sm:$0xff]
    %v282 = vld [vmem:[%s3 + $0x70] sm:$0xff]
    %v283 = vld [vmem:[%s3 + $0x78] sm:$0xff]
    %vm284 = vcmask 523264
    %v286 = vsel %vm284, 0.0, 0
    %288 = vmatprep.subr.mxu0 0.0
    %289 = vmatpush1.msra.mxu0 0.0
    %290 = vmatprep.subr.mxu0 0.0
    %291 = vmatpush1.msra.mxu0 0.0
    %292 = vmatprep.subr.mxu0 0.0
    %293 = vmatpush1.msra.mxu0 0.0
    %294 = vmatprep.subr.mxu0 0.0
    %295 = vmatpush1.msra.mxu0 0.0
    %296 = vmatprep.subr.mxu0 0.0
    %297 = vmatpush1.msra.mxu0 0.0
    %298 = vmatprep.subr.mxu0 0.0
    %299 = vmatpush1.msra.mxu0 0.0
    %300 = vmatprep.subr.mxu0 0.0
    %301 = vmatpush1.msra.mxu0 0.0
    %302 = vmatprep.subr.mxu0 0.0
    %303 = vmatpush1.msra.mxu0 0.0
    %304 = vmatprep.subr.mxu0 %v283
    %305 = vmatpush1.msra.mxu0 %v282
    %306 = vmatprep.subr.mxu0 %v281
    %307 = vmatpush1.msra.mxu0 %v280
    %308 = vmatprep.subr.mxu0 %v279
    %309 = vmatpush1.msra.mxu0 %v278
    %310 = vmatprep.subr.mxu0 %v277
    %311 = vmatpush1.msra.mxu0 %v276
    %312 = vmatprep.subr.mxu0 %v275
    %313 = vmatpush1.msra.mxu0 %v274
    %314 = vmatprep.subr.mxu0 %v273
    %315 = vmatpush1.msra.mxu0 %v272
    %316 = vmatprep.subr.mxu0 %v271
    %317 = vmatpush1.msra.mxu0 %v270
    %318 = vmatprep.subr.mxu0 %v269
    %319 = vmatpush1.msra.mxu0 %v268
    %320 = vmatprep.subr.mxu0 0.0
    %321 = vmatpush2.msra.mxu0 0.0
    %322 = vmatprep.subr.mxu0 0.0
    %323 = vmatpush2.msra.mxu0 0.0
    %324 = vmatprep.subr.mxu0 0.0
    %325 = vmatpush2.msra.mxu0 0.0
    %326 = vmatprep.subr.mxu0 0.0
    %327 = vmatpush2.msra.mxu0 0.0
    %328 = vmatprep.subr.mxu0 0.0
    %329 = vmatpush2.msra.mxu0 0.0
    %330 = vmatprep.subr.mxu0 0.0
    %331 = vmatpush2.msra.mxu0 0.0
    %332 = vmatprep.subr.mxu0 0.0
    %333 = vmatpush2.msra.mxu0 0.0
    %334 = vmatprep.subr.mxu0 0.0
    %335 = vmatpush2.msra.mxu0 0.0
    %336 = vmatprep.subr.mxu0 0.0
    %337 = vmatpush2.msra.mxu0 0.0
    %338 = vmatprep.subr.mxu0 0.0
    %339 = vmatpush2.msra.mxu0 0.0
    %340 = vmatprep.subr.mxu0 0.0
    %341 = vmatpush2.msra.mxu0 0.0
    %342 = vmatprep.subr.mxu0 0.0
    %343 = vmatpush2.msra.mxu0 0.0
    %344 = vmatprep.subr.mxu0 0.0
    %345 = vmatpush2.msra.mxu0 0.0
    %346 = vmatprep.subr.mxu0 0.0
    %347 = vmatpush2.msra.mxu0 0.0
    %348 = vmatprep.subr.mxu0 0.0
    %349 = vmatpush2.msra.mxu0 0.0
    %350 = vmatprep.subr.mxu0 0.0
    %351 = vmatpush2.msra.mxu0 0.0
    %352 = vmatprep.mubr.f32.mxu0 0.0
    %353 = vmatmul.mubr.f32.gmra.mxu0 %v286
    %v354 = vpop.f32.mrf.mxu0
    %v355 = vadd.f32 0.0, %v354
    %v356 = vpop.f32.mrf.mxu0
    %v357 = vadd.f32 0.0, %v356
    %358 = vdwg.mxu0
    %v359 = vadd.f32 %v266, %v355
    %v360 = vadd.f32 %v267, %v357
    %v361 = vtanh.pop %v359
    %v362 = vtanh.pop %v360
    %v363 = vmul.f32 %v361, 0.5
    %v364 = vmul.f32 %v362, 0.5
    %v365 = vadd.f32 %v363, 0.5
    %v366 = vadd.f32 %v364, 0.5
    %v367 = vsel %vm254, %v361, %v365
    %v368 = vsel %vm255, %v362, %v366
    %v369 = vmul.f32 %v367, 0.0
    %v370 = vmul.f32 %v367, %v368
    %372 = vrot.lane.b32.xlu0 %v370, 64
    %v373 = vpop.permute.xlu0 %372
    %v375 = vadd.f32 %v369, %v373
    %v376 = vtanh.pop %v375
    %v377 = vmul.f32 %v368, %v376
    %s378 = smul.u32 1, 2
    %s379 = smul.addr %s378, 8
    %s380 = scalar_lea.vmem [#allocation2], %s379
    %v381 = vld [vmem:[%s380] sm:$0xff]
    %v382 = vld [vmem:[%s380 + $0x8] sm:$0xff]
    %s383 = smul.u32 6, 2
    %s384 = smul.addr %s383, 8
    %s385 = scalar_lea.vmem [#allocation2], %s384
    %v386 = vld [vmem:[%s385] sm:$0xff]
    %v387 = vld [vmem:[%s385 + $0x8] sm:$0xff]
    %v388 = vsel %vm248, %v381, %v386
    %v389 = vsel %vm249, %v382, %v387
    %391 = vrot.lane.b32.xlu0 %v377, 64
    %v392 = vpop.permute.xlu0 %391
    %v393 = vsel %vm284, %v392, 0
    %395 = vmatprep.subr.mxu0 0.0
    %396 = vmatpush1.msra.mxu0 0.0
    %397 = vmatprep.subr.mxu0 0.0
    %398 = vmatpush1.msra.mxu0 0.0
    %399 = vmatprep.subr.mxu0 0.0
    %400 = vmatpush1.msra.mxu0 0.0
    %401 = vmatprep.subr.mxu0 0.0
    %402 = vmatpush1.msra.mxu0 0.0
    %403 = vmatprep.subr.mxu0 0.0
    %404 = vmatpush1.msra.mxu0 0.0
    %405 = vmatprep.subr.mxu0 0.0
    %406 = vmatpush1.msra.mxu0 0.0
    %407 = vmatprep.subr.mxu0 0.0
    %408 = vmatpush1.msra.mxu0 0.0
    %409 = vmatprep.subr.mxu0 0.0
    %410 = vmatpush1.msra.mxu0 0.0
    %411 = vmatprep.subr.mxu0 %v283
    %412 = vmatpush1.msra.mxu0 %v282
    %413 = vmatprep.subr.mxu0 %v281
    %414 = vmatpush1.msra.mxu0 %v280
    %415 = vmatprep.subr.mxu0 %v279
    %416 = vmatpush1.msra.mxu0 %v278
    %417 = vmatprep.subr.mxu0 %v277
    %418 = vmatpush1.msra.mxu0 %v276
    %419 = vmatprep.subr.mxu0 %v275
    %420 = vmatpush1.msra.mxu0 %v274
    %421 = vmatprep.subr.mxu0 %v273
    %422 = vmatpush1.msra.mxu0 %v272
    %423 = vmatprep.subr.mxu0 %v271
    %424 = vmatpush1.msra.mxu0 %v270
    %425 = vmatprep.subr.mxu0 %v269
    %426 = vmatpush1.msra.mxu0 %v268
    %427 = vmatprep.subr.mxu0 0.0
    %428 = vmatpush2.msra.mxu0 0.0
    %429 = vmatprep.subr.mxu0 0.0
    %430 = vmatpush2.msra.mxu0 0.0
    %431 = vmatprep.subr.mxu0 0.0
    %432 = vmatpush2.msra.mxu0 0.0
    %433 = vmatprep.subr.mxu0 0.0
    %434 = vmatpush2.msra.mxu0 0.0
    %435 = vmatprep.subr.mxu0 0.0
    %436 = vmatpush2.msra.mxu0 0.0
    %437 = vmatprep.subr.mxu0 0.0
    %438 = vmatpush2.msra.mxu0 0.0
    %439 = vmatprep.subr.mxu0 0.0
    %440 = vmatpush2.msra.mxu0 0.0
    %441 = vmatprep.subr.mxu0 0.0
    %442 = vmatpush2.msra.mxu0 0.0
    %443 = vmatprep.subr.mxu0 0.0
    %444 = vmatpush2.msra.mxu0 0.0
    %445 = vmatprep.subr.mxu0 0.0
    %446 = vmatpush2.msra.mxu0 0.0
    %447 = vmatprep.subr.mxu0 0.0
    %448 = vmatpush2.msra.mxu0 0.0
    %449 = vmatprep.subr.mxu0 0.0
    %450 = vmatpush2.msra.mxu0 0.0
    %451 = vmatprep.subr.mxu0 0.0
    %452 = vmatpush2.msra.mxu0 0.0
    %453 = vmatprep.subr.mxu0 0.0
    %454 = vmatpush2.msra.mxu0 0.0
    %455 = vmatprep.subr.mxu0 0.0
    %456 = vmatpush2.msra.mxu0 0.0
    %457 = vmatprep.subr.mxu0 0.0
    %458 = vmatpush2.msra.mxu0 0.0
    %459 = vmatprep.mubr.f32.mxu0 0.0
    %460 = vmatmul.mubr.f32.gmra.mxu0 %v393
    %v461 = vpop.f32.mrf.mxu0
    %v462 = vadd.f32 0.0, %v461
    %v463 = vpop.f32.mrf.mxu0
    %v464 = vadd.f32 0.0, %v463
    %465 = vdwg.mxu0
    %v466 = vadd.f32 %v388, %v462
    %v467 = vadd.f32 %v389, %v464
    %v468 = vtanh.pop %v466
    %v469 = vtanh.pop %v467
    %v470 = vmul.f32 %v468, 0.5
    %v471 = vmul.f32 %v469, 0.5
    %v472 = vadd.f32 %v470, 0.5
    %v473 = vadd.f32 %v471, 0.5
    %v474 = vsel %vm254, %v468, %v472
    %v475 = vsel %vm255, %v469, %v473
    %v476 = vmul.f32 %v474, %v375
    %v477 = vmul.f32 %v474, %v475
    %479 = vrot.lane.b32.xlu0 %v477, 64
    %v480 = vpop.permute.xlu0 %479
    %v482 = vadd.f32 %v476, %v480
    %v483 = vtanh.pop %v482
    %v484 = vmul.f32 %v475, %v483
    %s485 = smul.u32 2, 2
    %s486 = smul.addr %s485, 8
    %s487 = scalar_lea.vmem [#allocation2], %s486
    %v488 = vld [vmem:[%s487] sm:$0xff]
    %v489 = vld [vmem:[%s487 + $0x8] sm:$0xff]
    %s490 = smul.u32 5, 2
    %s491 = smul.addr %s490, 8
    %s492 = scalar_lea.vmem [#allocation2], %s491
    %v493 = vld [vmem:[%s492] sm:$0xff]
    %v494 = vld [vmem:[%s492 + $0x8] sm:$0xff]
    %v495 = vsel %vm248, %v488, %v493
    %v496 = vsel %vm249, %v489, %v494
    %498 = vrot.lane.b32.xlu0 %v484, 64
    %v499 = vpop.permute.xlu0 %498
    %v500 = vsel %vm284, %v499, 0
    %502 = vmatprep.subr.mxu0 0.0
    %503 = vmatpush1.msra.mxu0 0.0
    %504 = vmatprep.subr.mxu0 0.0
    %505 = vmatpush1.msra.mxu0 0.0
    %506 = vmatprep.subr.mxu0 0.0
    %507 = vmatpush1.msra.mxu0 0.0
    %508 = vmatprep.subr.mxu0 0.0
    %509 = vmatpush1.msra.mxu0 0.0
    %510 = vmatprep.subr.mxu0 0.0
    %511 = vmatpush1.msra.mxu0 0.0
    %512 = vmatprep.subr.mxu0 0.0
    %513 = vmatpush1.msra.mxu0 0.0
    %514 = vmatprep.subr.mxu0 0.0
    %515 = vmatpush1.msra.mxu0 0.0
    %516 = vmatprep.subr.mxu0 0.0
    %517 = vmatpush1.msra.mxu0 0.0
    %518 = vmatprep.subr.mxu0 %v283
    %519 = vmatpush1.msra.mxu0 %v282
    %520 = vmatprep.subr.mxu0 %v281
    %521 = vmatpush1.msra.mxu0 %v280
    %522 = vmatprep.subr.mxu0 %v279
    %523 = vmatpush1.msra.mxu0 %v278
    %524 = vmatprep.subr.mxu0 %v277
    %525 = vmatpush1.msra.mxu0 %v276
    %526 = vmatprep.subr.mxu0 %v275
    %527 = vmatpush1.msra.mxu0 %v274
    %528 = vmatprep.subr.mxu0 %v273
    %529 = vmatpush1.msra.mxu0 %v272
    %530 = vmatprep.subr.mxu0 %v271
    %531 = vmatpush1.msra.mxu0 %v270
    %532 = vmatprep.subr.mxu0 %v269
    %533 = vmatpush1.msra.mxu0 %v268
    %534 = vmatprep.subr.mxu0 0.0
    %535 = vmatpush2.msra.mxu0 0.0
    %536 = vmatprep.subr.mxu0 0.0
    %537 = vmatpush2.msra.mxu0 0.0
    %538 = vmatprep.subr.mxu0 0.0
    %539 = vmatpush2.msra.mxu0 0.0
    %540 = vmatprep.subr.mxu0 0.0
    %541 = vmatpush2.msra.mxu0 0.0
    %542 = vmatprep.subr.mxu0 0.0
    %543 = vmatpush2.msra.mxu0 0.0
    %544 = vmatprep.subr.mxu0 0.0
    %545 = vmatpush2.msra.mxu0 0.0
    %546 = vmatprep.subr.mxu0 0.0
    %547 = vmatpush2.msra.mxu0 0.0
    %548 = vmatprep.subr.mxu0 0.0
    %549 = vmatpush2.msra.mxu0 0.0
    %550 = vmatprep.subr.mxu0 0.0
    %551 = vmatpush2.msra.mxu0 0.0
    %552 = vmatprep.subr.mxu0 0.0
    %553 = vmatpush2.msra.mxu0 0.0
    %554 = vmatprep.subr.mxu0 0.0
    %555 = vmatpush2.msra.mxu0 0.0
    %556 = vmatprep.subr.mxu0 0.0
    %557 = vmatpush2.msra.mxu0 0.0
    %558 = vmatprep.subr.mxu0 0.0
    %559 = vmatpush2.msra.mxu0 0.0
    %560 = vmatprep.subr.mxu0 0.0
    %561 = vmatpush2.msra.mxu0 0.0
    %562 = vmatprep.subr.mxu0 0.0
    %563 = vmatpush2.msra.mxu0 0.0
    %564 = vmatprep.subr.mxu0 0.0
    %565 = vmatpush2.msra.mxu0 0.0
    %566 = vmatprep.mubr.f32.mxu0 0.0
    %567 = vmatmul.mubr.f32.gmra.mxu0 %v500
    %v568 = vpop.f32.mrf.mxu0
    %v569 = vadd.f32 0.0, %v568
    %v570 = vpop.f32.mrf.mxu0
    %v571 = vadd.f32 0.0, %v570
    %572 = vdwg.mxu0
    %v573 = vadd.f32 %v495, %v569
    %v574 = vadd.f32 %v496, %v571
    %v575 = vtanh.pop %v573
    %v576 = vtanh.pop %v574
    %v577 = vmul.f32 %v575, 0.5
    %v578 = vmul.f32 %v576, 0.5
    %v579 = vadd.f32 %v577, 0.5
    %v580 = vadd.f32 %v578, 0.5
    %v581 = vsel %vm254, %v575, %v579
    %v582 = vsel %vm255, %v576, %v580
    %v583 = vmul.f32 %v581, %v482
    %v584 = vmul.f32 %v581, %v582
    %586 = vrot.lane.b32.xlu0 %v584, 64
    %v587 = vpop.permute.xlu0 %586
    %v589 = vadd.f32 %v583, %v587
    %v590 = vtanh.pop %v589
    %v591 = vmul.f32 %v582, %v590
    %s592 = smul.u32 3, 2
    %s593 = smul.addr %s592, 8
    %s594 = scalar_lea.vmem [#allocation2], %s593
    %v595 = vld [vmem:[%s594] sm:$0xff]
    %v596 = vld [vmem:[%s594 + $0x8] sm:$0xff]
    %s597 = smul.u32 4, 2
    %s598 = smul.addr %s597, 8
    %s599 = scalar_lea.vmem [#allocation2], %s598
    %v600 = vld [vmem:[%s599] sm:$0xff]
    %v601 = vld [vmem:[%s599 + $0x8] sm:$0xff]
    %v602 = vsel %vm248, %v595, %v600
    %v603 = vsel %vm249, %v596, %v601
    %605 = vrot.lane.b32.xlu0 %v591, 64
    %v606 = vpop.permute.xlu0 %605
    %v607 = vsel %vm284, %v606, 0
    %609 = vmatprep.subr.mxu0 0.0
    %610 = vmatpush1.msra.mxu0 0.0
    %611 = vmatprep.subr.mxu0 0.0
    %612 = vmatpush1.msra.mxu0 0.0
    %613 = vmatprep.subr.mxu0 0.0
    %614 = vmatpush1.msra.mxu0 0.0
    %615 = vmatprep.subr.mxu0 0.0
    %616 = vmatpush1.msra.mxu0 0.0
    %617 = vmatprep.subr.mxu0 0.0
    %618 = vmatpush1.msra.mxu0 0.0
    %619 = vmatprep.subr.mxu0 0.0
    %620 = vmatpush1.msra.mxu0 0.0
    %621 = vmatprep.subr.mxu0 0.0
    %622 = vmatpush1.msra.mxu0 0.0
    %623 = vmatprep.subr.mxu0 0.0
    %624 = vmatpush1.msra.mxu0 0.0
    %625 = vmatprep.subr.mxu0 %v283
    %626 = vmatpush1.msra.mxu0 %v282
    %627 = vmatprep.subr.mxu0 %v281
    %628 = vmatpush1.msra.mxu0 %v280
    %629 = vmatprep.subr.mxu0 %v279
    %630 = vmatpush1.msra.mxu0 %v278
    %631 = vmatprep.subr.mxu0 %v277
    %632 = vmatpush1.msra.mxu0 %v276
    %633 = vmatprep.subr.mxu0 %v275
    %634 = vmatpush1.msra.mxu0 %v274
    %635 = vmatprep.subr.mxu0 %v273
    %636 = vmatpush1.msra.mxu0 %v272
    %637 = vmatprep.subr.mxu0 %v271
    %638 = vmatpush1.msra.mxu0 %v270
    %639 = vmatprep.subr.mxu0 %v269
    %640 = vmatpush1.msra.mxu0 %v268
    %641 = vmatprep.subr.mxu0 0.0
    %642 = vmatpush2.msra.mxu0 0.0
    %643 = vmatprep.subr.mxu0 0.0
    %644 = vmatpush2.msra.mxu0 0.0
    %645 = vmatprep.subr.mxu0 0.0
    %646 = vmatpush2.msra.mxu0 0.0
    %647 = vmatprep.subr.mxu0 0.0
    %648 = vmatpush2.msra.mxu0 0.0
    %649 = vmatprep.subr.mxu0 0.0
    %650 = vmatpush2.msra.mxu0 0.0
    %651 = vmatprep.subr.mxu0 0.0
    %652 = vmatpush2.msra.mxu0 0.0
    %653 = vmatprep.subr.mxu0 0.0
    %654 = vmatpush2.msra.mxu0 0.0
    %655 = vmatprep.subr.mxu0 0.0
    %656 = vmatpush2.msra.mxu0 0.0
    %657 = vmatprep.subr.mxu0 0.0
    %658 = vmatpush2.msra.mxu0 0.0
    %659 = vmatprep.subr.mxu0 0.0
    %660 = vmatpush2.msra.mxu0 0.0
    %661 = vmatprep.subr.mxu0 0.0
    %662 = vmatpush2.msra.mxu0 0.0
    %663 = vmatprep.subr.mxu0 0.0
    %664 = vmatpush2.msra.mxu0 0.0
    %665 = vmatprep.subr.mxu0 0.0
    %666 = vmatpush2.msra.mxu0 0.0
    %667 = vmatprep.subr.mxu0 0.0
    %668 = vmatpush2.msra.mxu0 0.0
    %669 = vmatprep.subr.mxu0 0.0
    %670 = vmatpush2.msra.mxu0 0.0
    %671 = vmatprep.subr.mxu0 0.0
    %672 = vmatpush2.msra.mxu0 0.0
    %673 = vmatprep.mubr.f32.mxu0 0.0
    %674 = vmatmul.mubr.f32.gmra.mxu0 %v607
    %v675 = vpop.f32.mrf.mxu0
    %v676 = vadd.f32 0.0, %v675
    %v677 = vpop.f32.mrf.mxu0
    %v678 = vadd.f32 0.0, %v677
    %679 = vdwg.mxu0
    %v680 = vadd.f32 %v602, %v676
    %v681 = vadd.f32 %v603, %v678
    %v682 = vtanh.pop %v680
    %v683 = vtanh.pop %v681
    %v684 = vmul.f32 %v682, 0.5
    %v685 = vmul.f32 %v683, 0.5
    %v686 = vadd.f32 %v684, 0.5
    %v687 = vadd.f32 %v685, 0.5
    %v688 = vsel %vm254, %v682, %v686
    %v689 = vsel %vm255, %v683, %v687
    %v690 = vmul.f32 %v688, %v589
    %v691 = vmul.f32 %v688, %v689
    %693 = vrot.lane.b32.xlu0 %v691, 64
    %v694 = vpop.permute.xlu0 %693
    %v696 = vadd.f32 %v690, %v694
    %v697 = vtanh.pop %v696
    %v698 = vmul.f32 %v689, %v697
    %v699 = vsel %vm248, %v600, %v595
    %v700 = vsel %vm249, %v601, %v596
    %702 = vrot.lane.b32.xlu0 %v698, 64
    %v703 = vpop.permute.xlu0 %702
    %v704 = vsel %vm284, %v703, 0
    %706 = vmatprep.subr.mxu0 0.0
    %707 = vmatpush1.msra.mxu0 0.0
    %708 = vmatprep.subr.mxu0 0.0
    %709 = vmatpush1.msra.mxu0 0.0
    %710 = vmatprep.subr.mxu0 0.0
    %711 = vmatpush1.msra.mxu0 0.0
    %712 = vmatprep.subr.mxu0 0.0
    %713 = vmatpush1.msra.mxu0 0.0
    %714 = vmatprep.subr.mxu0 0.0
    %715 = vmatpush1.msra.mxu0 0.0
    %716 = vmatprep.subr.mxu0 0.0
    %717 = vmatpush1.msra.mxu0 0.0
    %718 = vmatprep.subr.mxu0 0.0
    %719 = vmatpush1.msra.mxu0 0.0
    %720 = vmatprep.subr.mxu0 0.0
    %721 = vmatpush1.msra.mxu0 0.0
    %722 = vmatprep.subr.mxu0 %v283
    %723 = vmatpush1.msra.mxu0 %v282
    %724 = vmatprep.subr.mxu0 %v281
    %725 = vmatpush1.msra.mxu0 %v280
    %726 = vmatprep.subr.mxu0 %v279
    %727 = vmatpush1.msra.mxu0 %v278
    %728 = vmatprep.subr.mxu0 %v277
    %729 = vmatpush1.msra.mxu0 %v276
    %730 = vmatprep.subr.mxu0 %v275
    %731 = vmatpush1.msra.mxu0 %v274
    %732 = vmatprep.subr.mxu0 %v273
    %733 = vmatpush1.msra.mxu0 %v272
    %734 = vmatprep.subr.mxu0 %v271
    %735 = vmatpush1.msra.mxu0 %v270
    %736 = vmatprep.subr.mxu0 %v269
    %737 = vmatpush1.msra.mxu0 %v268
    %738 = vmatprep.subr.mxu0 0.0
    %739 = vmatpush2.msra.mxu0 0.0
    %740 = vmatprep.subr.mxu0 0.0
    %741 = vmatpush2.msra.mxu0 0.0
    %742 = vmatprep.subr.mxu0 0.0
    %743 = vmatpush2.msra.mxu0 0.0
    %744 = vmatprep.subr.mxu0 0.0
    %745 = vmatpush2.msra.mxu0 0.0
    %746 = vmatprep.subr.mxu0 0.0
    %747 = vmatpush2.msra.mxu0 0.0
    %748 = vmatprep.subr.mxu0 0.0
    %749 = vmatpush2.msra.mxu0 0.0
    %750 = vmatprep.subr.mxu0 0.0
    %751 = vmatpush2.msra.mxu0 0.0
    %752 = vmatprep.subr.mxu0 0.0
    %753 = vmatpush2.msra.mxu0 0.0
    %754 = vmatprep.subr.mxu0 0.0
    %755 = vmatpush2.msra.mxu0 0.0
    %756 = vmatprep.subr.mxu0 0.0
    %757 = vmatpush2.msra.mxu0 0.0
    %758 = vmatprep.subr.mxu0 0.0
    %759 = vmatpush2.msra.mxu0 0.0
    %760 = vmatprep.subr.mxu0 0.0
    %761 = vmatpush2.msra.mxu0 0.0
    %762 = vmatprep.subr.mxu0 0.0
    %763 = vmatpush2.msra.mxu0 0.0
    %764 = vmatprep.subr.mxu0 0.0
    %765 = vmatpush2.msra.mxu0 0.0
    %766 = vmatprep.subr.mxu0 0.0
    %767 = vmatpush2.msra.mxu0 0.0
    %768 = vmatprep.subr.mxu0 0.0
    %769 = vmatpush2.msra.mxu0 0.0
    %770 = vmatprep.mubr.f32.mxu0 0.0
    %771 = vmatmul.mubr.f32.gmra.mxu0 %v704
    %v772 = vpop.f32.mrf.mxu0
    %v773 = vadd.f32 0.0, %v772
    %v774 = vpop.f32.mrf.mxu0
    %v775 = vadd.f32 0.0, %v774
    %776 = vdwg.mxu0
    %v777 = vadd.f32 %v699, %v773
    %v778 = vadd.f32 %v700, %v775
    %v779 = vtanh.pop %v777
    %v780 = vtanh.pop %v778
    %v781 = vmul.f32 %v779, 0.5
    %v782 = vmul.f32 %v780, 0.5
    %v783 = vadd.f32 %v781, 0.5
    %v784 = vadd.f32 %v782, 0.5
    %v785 = vsel %vm254, %v779, %v783
    %v786 = vsel %vm255, %v780, %v784
    %v787 = vmul.f32 %v785, %v696
    %v788 = vmul.f32 %v785, %v786
    %790 = vrot.lane.b32.xlu0 %v788, 64
    %v791 = vpop.permute.xlu0 %790
    %v793 = vadd.f32 %v787, %v791
    %v794 = vtanh.pop %v793
    %v795 = vmul.f32 %v786, %v794
    %v796 = vsel %vm248, %v493, %v488
    %v797 = vsel %vm249, %v494, %v489
    %799 = vrot.lane.b32.xlu0 %v795, 64
    %v800 = vpop.permute.xlu0 %799
    %v801 = vsel %vm284, %v800, 0
    %803 = vmatprep.subr.mxu0 0.0
    %804 = vmatpush1.msra.mxu0 0.0
    %805 = vmatprep.subr.mxu0 0.0
    %806 = vmatpush1.msra.mxu0 0.0
    %807 = vmatprep.subr.mxu0 0.0
    %808 = vmatpush1.msra.mxu0 0.0
    %809 = vmatprep.subr.mxu0 0.0
    %810 = vmatpush1.msra.mxu0 0.0
    %811 = vmatprep.subr.mxu0 0.0
    %812 = vmatpush1.msra.mxu0 0.0
    %813 = vmatprep.subr.mxu0 0.0
    %814 = vmatpush1.msra.mxu0 0.0
    %815 = vmatprep.subr.mxu0 0.0
    %816 = vmatpush1.msra.mxu0 0.0
    %817 = vmatprep.subr.mxu0 0.0
    %818 = vmatpush1.msra.mxu0 0.0
    %819 = vmatprep.subr.mxu0 %v283
    %820 = vmatpush1.msra.mxu0 %v282
    %821 = vmatprep.subr.mxu0 %v281
    %822 = vmatpush1.msra.mxu0 %v280
    %823 = vmatprep.subr.mxu0 %v279
    %824 = vmatpush1.msra.mxu0 %v278
    %825 = vmatprep.subr.mxu0 %v277
    %826 = vmatpush1.msra.mxu0 %v276
    %827 = vmatprep.subr.mxu0 %v275
    %828 = vmatpush1.msra.mxu0 %v274
    %829 = vmatprep.subr.mxu0 %v273
    %830 = vmatpush1.msra.mxu0 %v272
    %831 = vmatprep.subr.mxu0 %v271
    %832 = vmatpush1.msra.mxu0 %v270
    %833 = vmatprep.subr.mxu0 %v269
    %834 = vmatpush1.msra.mxu0 %v268
    %835 = vmatprep.subr.mxu0 0.0
    %836 = vmatpush2.msra.mxu0 0.0
    %837 = vmatprep.subr.mxu0 0.0
    %838 = vmatpush2.msra.mxu0 0.0
    %839 = vmatprep.subr.mxu0 0.0
    %840 = vmatpush2.msra.mxu0 0.0
    %841 = vmatprep.subr.mxu0 0.0
    %842 = vmatpush2.msra.mxu0 0.0
    %843 = vmatprep.subr.mxu0 0.0
    %844 = vmatpush2.msra.mxu0 0.0
    %845 = vmatprep.subr.mxu0 0.0
    %846 = vmatpush2.msra.mxu0 0.0
    %847 = vmatprep.subr.mxu0 0.0
    %848 = vmatpush2.msra.mxu0 0.0
    %849 = vmatprep.subr.mxu0 0.0
    %850 = vmatpush2.msra.mxu0 0.0
    %851 = vmatprep.subr.mxu0 0.0
    %852 = vmatpush2.msra.mxu0 0.0
    %853 = vmatprep.subr.mxu0 0.0
    %854 = vmatpush2.msra.mxu0 0.0
    %855 = vmatprep.subr.mxu0 0.0
    %856 = vmatpush2.msra.mxu0 0.0
    %857 = vmatprep.subr.mxu0 0.0
    %858 = vmatpush2.msra.mxu0 0.0
    %859 = vmatprep.subr.mxu0 0.0
    %860 = vmatpush2.msra.mxu0 0.0
    %861 = vmatprep.subr.mxu0 0.0
    %862 = vmatpush2.msra.mxu0 0.0
    %863 = vmatprep.subr.mxu0 0.0
    %864 = vmatpush2.msra.mxu0 0.0
    %865 = vmatprep.subr.mxu0 0.0
    %866 = vmatpush2.msra.mxu0 0.0
    %867 = vmatprep.mubr.f32.mxu0 0.0
    %868 = vmatmul.mubr.f32.gmra.mxu0 %v801
    %v869 = vpop.f32.mrf.mxu0
    %v870 = vadd.f32 0.0, %v869
    %v871 = vpop.f32.mrf.mxu0
    %v872 = vadd.f32 0.0, %v871
    %873 = vdwg.mxu0
    %v874 = vadd.f32 %v796, %v870
    %v875 = vadd.f32 %v797, %v872
    %v876 = vtanh.pop %v874
    %v877 = vtanh.pop %v875
    %v878 = vmul.f32 %v876, 0.5
    %v879 = vmul.f32 %v877, 0.5
    %v880 = vadd.f32 %v878, 0.5
    %v881 = vadd.f32 %v879, 0.5
    %v882 = vsel %vm254, %v876, %v880
    %v883 = vsel %vm255, %v877, %v881
    %v884 = vmul.f32 %v882, %v793
    %v885 = vmul.f32 %v882, %v883
    %887 = vrot.lane.b32.xlu0 %v885, 64
    %v888 = vpop.permute.xlu0 %887
    %v890 = vadd.f32 %v884, %v888
    %v891 = vtanh.pop %v890
    %v892 = vmul.f32 %v883, %v891
    %v893 = vsel %vm248, %v386, %v381
    %v894 = vsel %vm249, %v387, %v382
    %896 = vrot.lane.b32.xlu0 %v892, 64
    %v897 = vpop.permute.xlu0 %896
    %v898 = vsel %vm284, %v897, 0
    %900 = vmatprep.subr.mxu0 0.0
    %901 = vmatpush1.msra.mxu0 0.0
    %902 = vmatprep.subr.mxu0 0.0
    %903 = vmatpush1.msra.mxu0 0.0
    %904 = vmatprep.subr.mxu0 0.0
    %905 = vmatpush1.msra.mxu0 0.0
    %906 = vmatprep.subr.mxu0 0.0
    %907 = vmatpush1.msra.mxu0 0.0
    %908 = vmatprep.subr.mxu0 0.0
    %909 = vmatpush1.msra.mxu0 0.0
    %910 = vmatprep.subr.mxu0 0.0
    %911 = vmatpush1.msra.mxu0 0.0
    %912 = vmatprep.subr.mxu0 0.0
    %913 = vmatpush1.msra.mxu0 0.0
    %914 = vmatprep.subr.mxu0 0.0
    %915 = vmatpush1.msra.mxu0 0.0
    %916 = vmatprep.subr.mxu0 %v283
    %917 = vmatpush1.msra.mxu0 %v282
    %918 = vmatprep.subr.mxu0 %v281
    %919 = vmatpush1.msra.mxu0 %v280
    %920 = vmatprep.subr.mxu0 %v279
    %921 = vmatpush1.msra.mxu0 %v278
    %922 = vmatprep.subr.mxu0 %v277
    %923 = vmatpush1.msra.mxu0 %v276
    %924 = vmatprep.subr.mxu0 %v275
    %925 = vmatpush1.msra.mxu0 %v274
    %926 = vmatprep.subr.mxu0 %v273
    %927 = vmatpush1.msra.mxu0 %v272
    %928 = vmatprep.subr.mxu0 %v271
    %929 = vmatpush1.msra.mxu0 %v270
    %930 = vmatprep.subr.mxu0 %v269
    %931 = vmatpush1.msra.mxu0 %v268
    %932 = vmatprep.subr.mxu0 0.0
    %933 = vmatpush2.msra.mxu0 0.0
    %934 = vmatprep.subr.mxu0 0.0
    %935 = vmatpush2.msra.mxu0 0.0
    %936 = vmatprep.subr.mxu0 0.0
    %937 = vmatpush2.msra.mxu0 0.0
    %938 = vmatprep.subr.mxu0 0.0
    %939 = vmatpush2.msra.mxu0 0.0
    %940 = vmatprep.subr.mxu0 0.0
    %941 = vmatpush2.msra.mxu0 0.0
    %942 = vmatprep.subr.mxu0 0.0
    %943 = vmatpush2.msra.mxu0 0.0
    %944 = vmatprep.subr.mxu0 0.0
    %945 = vmatpush2.msra.mxu0 0.0
    %946 = vmatprep.subr.mxu0 0.0
    %947 = vmatpush2.msra.mxu0 0.0
    %948 = vmatprep.subr.mxu0 0.0
    %949 = vmatpush2.msra.mxu0 0.0
    %950 = vmatprep.subr.mxu0 0.0
    %951 = vmatpush2.msra.mxu0 0.0
    %952 = vmatprep.subr.mxu0 0.0
    %953 = vmatpush2.msra.mxu0 0.0
    %954 = vmatprep.subr.mxu0 0.0
    %955 = vmatpush2.msra.mxu0 0.0
    %956 = vmatprep.subr.mxu0 0.0
    %957 = vmatpush2.msra.mxu0 0.0
    %958 = vmatprep.subr.mxu0 0.0
    %959 = vmatpush2.msra.mxu0 0.0
    %960 = vmatprep.subr.mxu0 0.0
    %961 = vmatpush2.msra.mxu0 0.0
    %962 = vmatprep.subr.mxu0 0.0
    %963 = vmatpush2.msra.mxu0 0.0
    %964 = vmatprep.mubr.f32.mxu0 0.0
    %965 = vmatmul.mubr.f32.gmra.mxu0 %v898
    %v966 = vpop.f32.mrf.mxu0
    %v967 = vadd.f32 0.0, %v966
    %v968 = vpop.f32.mrf.mxu0
    %v969 = vadd.f32 0.0, %v968
    %970 = vdwg.mxu0
    %v971 = vadd.f32 %v893, %v967
    %v972 = vadd.f32 %v894, %v969
    %v973 = vtanh.pop %v971
    %v974 = vtanh.pop %v972
    %v975 = vmul.f32 %v973, 0.5
    %v976 = vmul.f32 %v974, 0.5
    %v977 = vadd.f32 %v975, 0.5
    %v978 = vadd.f32 %v976, 0.5
    %v979 = vsel %vm254, %v973, %v977
    %v980 = vsel %vm255, %v974, %v978
    %v981 = vmul.f32 %v979, %v890
    %v982 = vmul.f32 %v979, %v980
    %984 = vrot.lane.b32.xlu0 %v982, 64
    %v985 = vpop.permute.xlu0 %984
    %v987 = vadd.f32 %v981, %v985
    %v988 = vtanh.pop %v987
    %v989 = vmul.f32 %v980, %v988
    %v990 = vsel %vm248, %v264, %v259
    %v991 = vsel %vm249, %v265, %v260
    %993 = vrot.lane.b32.xlu0 %v989, 64
    %v994 = vpop.permute.xlu0 %993
    %v995 = vsel %vm284, %v994, 0
    %997 = vmatprep.subr.mxu0 0.0
    %998 = vmatpush1.msra.mxu0 0.0
    %999 = vmatprep.subr.mxu0 0.0
    %1000 = vmatpush1.msra.mxu0 0.0
    %1001 = vmatprep.subr.mxu0 0.0
    %1002 = vmatpush1.msra.mxu0 0.0
    %1003 = vmatprep.subr.mxu0 0.0
    %1004 = vmatpush1.msra.mxu0 0.0
    %1005 = vmatprep.subr.mxu0 0.0
    %1006 = vmatpush1.msra.mxu0 0.0
    %1007 = vmatprep.subr.mxu0 0.0
    %1008 = vmatpush1.msra.mxu0 0.0
    %1009 = vmatprep.subr.mxu0 0.0
    %1010 = vmatpush1.msra.mxu0 0.0
    %1011 = vmatprep.subr.mxu0 0.0
    %1012 = vmatpush1.msra.mxu0 0.0
    %1013 = vmatprep.subr.mxu0 %v283
    %1014 = vmatpush1.msra.mxu0 %v282
    %1015 = vmatprep.subr.mxu0 %v281
    %1016 = vmatpush1.msra.mxu0 %v280
    %1017 = vmatprep.subr.mxu0 %v279
    %1018 = vmatpush1.msra.mxu0 %v278
    %1019 = vmatprep.subr.mxu0 %v277
    %1020 = vmatpush1.msra.mxu0 %v276
    %1021 = vmatprep.subr.mxu0 %v275
    %1022 = vmatpush1.msra.mxu0 %v274
    %1023 = vmatprep.subr.mxu0 %v273
    %1024 = vmatpush1.msra.mxu0 %v272
    %1025 = vmatprep.subr.mxu0 %v271
    %1026 = vmatpush1.msra.mxu0 %v270
    %1027 = vmatprep.subr.mxu0 %v269
    %1028 = vmatpush1.msra.mxu0 %v268
    %1029 = vmatprep.subr.mxu0 0.0
    %1030 = vmatpush2.msra.mxu0 0.0
    %1031 = vmatprep.subr.mxu0 0.0
    %1032 = vmatpush2.msra.mxu0 0.0
    %1033 = vmatprep.subr.mxu0 0.0
    %1034 = vmatpush2.msra.mxu0 0.0
    %1035 = vmatprep.subr.mxu0 0.0
    %1036 = vmatpush2.msra.mxu0 0.0
    %1037 = vmatprep.subr.mxu0 0.0
    %1038 = vmatpush2.msra.mxu0 0.0
    %1039 = vmatprep.subr.mxu0 0.0
    %1040 = vmatpush2.msra.mxu0 0.0
    %1041 = vmatprep.subr.mxu0 0.0
    %1042 = vmatpush2.msra.mxu0 0.0
    %1043 = vmatprep.subr.mxu0 0.0
    %1044 = vmatpush2.msra.mxu0 0.0
    %1045 = vmatprep.subr.mxu0 0.0
    %1046 = vmatpush2.msra.mxu0 0.0
    %1047 = vmatprep.subr.mxu0 0.0
    %1048 = vmatpush2.msra.mxu0 0.0
    %1049 = vmatprep.subr.mxu0 0.0
    %1050 = vmatpush2.msra.mxu0 0.0
    %1051 = vmatprep.subr.mxu0 0.0
    %1052 = vmatpush2.msra.mxu0 0.0
    %1053 = vmatprep.subr.mxu0 0.0
    %1054 = vmatpush2.msra.mxu0 0.0
    %1055 = vmatprep.subr.mxu0 0.0
    %1056 = vmatpush2.msra.mxu0 0.0
    %1057 = vmatprep.subr.mxu0 0.0
    %1058 = vmatpush2.msra.mxu0 0.0
    %1059 = vmatprep.subr.mxu0 0.0
    %1060 = vmatpush2.msra.mxu0 0.0
    %1061 = vmatprep.mubr.f32.mxu0 0.0
    %1062 = vmatmul.mubr.f32.gmra.mxu0 %v995
    %v1063 = vpop.f32.mrf.mxu0
    %v1064 = vadd.f32 0.0, %v1063
    %v1065 = vpop.f32.mrf.mxu0
    %v1066 = vadd.f32 0.0, %v1065
    %1067 = vdwg.mxu0
    %v1068 = vadd.f32 %v990, %v1064
    %v1069 = vadd.f32 %v991, %v1066
    %v1070 = vtanh.pop %v1068
    %v1071 = vtanh.pop %v1069
    %v1072 = vmul.f32 %v1070, 0.5
    %v1073 = vmul.f32 %v1071, 0.5
    %v1074 = vadd.f32 %v1072, 0.5
    %v1075 = vadd.f32 %v1073, 0.5
    %v1076 = vsel %vm254, %v1070, %v1074
    %v1077 = vsel %vm255, %v1071, %v1075
    %v1078 = vmul.f32 %v1076, %v987
    %v1079 = vmul.f32 %v1076, %v1077
    %1081 = vrot.lane.b32.xlu0 %v1079, 64
    %v1082 = vpop.permute.xlu0 %1081
    %v1084 = vadd.f32 %v1078, %v1082
    %v1085 = vtanh.pop %v1084
    %v1086 = vmul.f32 %v1077, %v1085
    %v1087 = vld [vmem:[%s4] sm:$0xff]
    %v1088 = vld [vmem:[%s4 + $0x8] sm:$0xff]
    %v1089 = vld [vmem:[%s4 + $0x10] sm:$0xff]
    %v1090 = vld [vmem:[%s4 + $0x18] sm:$0xff]
    %v1091 = vld [vmem:[%s4 + $0x20] sm:$0xff]
    %v1092 = vld [vmem:[%s4 + $0x28] sm:$0xff]
    %v1093 = vld [vmem:[%s4 + $0x30] sm:$0xff]
    %v1094 = vld [vmem:[%s4 + $0x38] sm:$0xff]
    %v1095 = vld [vmem:[#allocation3] sm:$0x1]
    %v1097 = vlaneseq
    %v1098 = vshrl.u32 %v1097, 7
    %v1099 = vsub.s32 0, %v1098
    %v1100 = vrot.slane %v1095, %v1099
    %1103 = vrot.lane.b32.xlu0 %v1086, 64
    %v1104 = vpop.permute.xlu0 %1103
    %v1105 = vsel %vm284, %v1104, 0
    %1107 = vmatprep.subr.mxu0 0.0
    %1108 = vmatpush1.msra.mxu0 0.0
    %1109 = vmatprep.subr.mxu0 0.0
    %1110 = vmatpush1.msra.mxu0 0.0
    %1111 = vmatprep.subr.mxu0 0.0
    %1112 = vmatpush1.msra.mxu0 0.0
    %1113 = vmatprep.subr.mxu0 0.0
    %1114 = vmatpush1.msra.mxu0 0.0
    %1115 = vmatprep.subr.mxu0 0.0
    %1116 = vmatpush1.msra.mxu0 0.0
    %1117 = vmatprep.subr.mxu0 0.0
    %1118 = vmatpush1.msra.mxu0 0.0
    %1119 = vmatprep.subr.mxu0 0.0
    %1120 = vmatpush1.msra.mxu0 0.0
    %1121 = vmatprep.subr.mxu0 0.0
    %1122 = vmatpush1.msra.mxu0 0.0
    %1123 = vmatprep.subr.mxu0 0.0
    %1124 = vmatpush1.msra.mxu0 %v1094
    %1125 = vmatprep.subr.mxu0 0.0
    %1126 = vmatpush1.msra.mxu0 %v1093
    %1127 = vmatprep.subr.mxu0 0.0
    %1128 = vmatpush1.msra.mxu0 %v1092
    %1129 = vmatprep.subr.mxu0 0.0
    %1130 = vmatpush1.msra.mxu0 %v1091
    %1131 = vmatprep.subr.mxu0 0.0
    %1132 = vmatpush1.msra.mxu0 %v1090
    %1133 = vmatprep.subr.mxu0 0.0
    %1134 = vmatpush1.msra.mxu0 %v1089
    %1135 = vmatprep.subr.mxu0 0.0
    %1136 = vmatpush1.msra.mxu0 %v1088
    %1137 = vmatprep.subr.mxu0 0.0
    %1138 = vmatpush1.msra.mxu0 %v1087
    %1139 = vmatprep.subr.mxu0 0.0
    %1140 = vmatpush2.msra.mxu0 0.0
    %1141 = vmatprep.subr.mxu0 0.0
    %1142 = vmatpush2.msra.mxu0 0.0
    %1143 = vmatprep.subr.mxu0 0.0
    %1144 = vmatpush2.msra.mxu0 0.0
    %1145 = vmatprep.subr.mxu0 0.0
    %1146 = vmatpush2.msra.mxu0 0.0
    %1147 = vmatprep.subr.mxu0 0.0
    %1148 = vmatpush2.msra.mxu0 0.0
    %1149 = vmatprep.subr.mxu0 0.0
    %1150 = vmatpush2.msra.mxu0 0.0
    %1151 = vmatprep.subr.mxu0 0.0
    %1152 = vmatpush2.msra.mxu0 0.0
    %1153 = vmatprep.subr.mxu0 0.0
    %1154 = vmatpush2.msra.mxu0 0.0
    %1155 = vmatprep.subr.mxu0 0.0
    %1156 = vmatpush2.msra.mxu0 0.0
    %1157 = vmatprep.subr.mxu0 0.0
    %1158 = vmatpush2.msra.mxu0 0.0
    %1159 = vmatprep.subr.mxu0 0.0
    %1160 = vmatpush2.msra.mxu0 0.0
    %1161 = vmatprep.subr.mxu0 0.0
    %1162 = vmatpush2.msra.mxu0 0.0
    %1163 = vmatprep.subr.mxu0 0.0
    %1164 = vmatpush2.msra.mxu0 0.0
    %1165 = vmatprep.subr.mxu0 0.0
    %1166 = vmatpush2.msra.mxu0 0.0
    %1167 = vmatprep.subr.mxu0 0.0
    %1168 = vmatpush2.msra.mxu0 0.0
    %1169 = vmatprep.subr.mxu0 0.0
    %1170 = vmatpush2.msra.mxu0 0.0
    %1171 = vmatprep.mubr.f32.mxu0 0.0
    %1172 = vmatmul.mubr.f32.gmra.mxu0 %v1105
    %v1173 = vpop.f32.mrf.mxu0
    %v1174 = vadd.f32 %v1100, %v1173
    %v1175 = vpop.f32.mrf.mxu0
    %1176 = vdwg.mxu0
    %vm1177 = vcmask 7168
    %1178 = vst.msk [vmem:[%s6] sm:$0xff] %vm1177, %v1174
    // Predicated region
    $region30: #{tpu_custom_call.1} parent=1 // pred_check
      _
    $region31: #{tpu_custom_call.1} parent=1 // pred_check_branch
      %1180 = sbr.rel (0) target = $region33
    $region32: #{tpu_custom_call.1} parent=1 // pred_region
      _
    $region33: #{tpu_custom_call.1} parent=1 // pred_fallthru
      _
    // Predicated region
    $region34: #{tpu_custom_call.1} parent=1 // pred_check
      _
    $region35: #{tpu_custom_call.1} parent=1 // pred_check_branch
      %1182 = sbr.rel (0) target = $region37
    $region36: #{tpu_custom_call.1} parent=1 // pred_region
      _
    $region37: #{tpu_custom_call.1} parent=1 // pred_fallthru
      _
    %1183 = vsyncpa [#allocation5], 1

</llo_original>
